<compile_context>
chip_gen: v7x
topology: tpu7x:2x2x1
jax: 0.10.0
libtpu: 0.0.40
codegen_flags: <defaults>
</compile_context>

<pallas_src>
import functools

import jax
import jax.numpy as jnp
from jax import lax
from jax.experimental import pallas as pl
from jax.experimental.pallas import tpu as pltpu


# --------------------------------------------------------------------------
# Hardware / tiling helpers
# --------------------------------------------------------------------------

def _vmem_capacity_bytes():
    """Per-core VMEM capacity; conservative (v7x-sized) fallback if the query fails."""
    try:
        info = pltpu.get_tpu_info()
        cap = getattr(info, "vmem_capacity_bytes", None)
        if cap:
            return int(cap)
    except Exception:
        pass
    return 64 * 1024 * 1024


def _pick_tile(total, maximum):
    """Largest tile that divides `total`, is a multiple of 8 and <= maximum.
    Falls back to `total` (one full block) when no such divisor exists."""
    if total <= maximum:
        return total
    t = (maximum // 8) * 8
    while t >= 8:
        if total % t == 0:
            return t
        t -= 8
    return total


def _row_tile(rows, lanes, itemsize=4, budget_bytes=4 * 1024 * 1024):
    """Row tile for (rows, lanes) slabs, sized against a per-block VMEM budget."""
    max_rows = max(8, budget_bytes // max(1, lanes * itemsize))
    return _pick_tile(rows, max_rows)


# --------------------------------------------------------------------------
# Pallas kernels
# --------------------------------------------------------------------------

def _colstats_kernel(x_ref, sum_ref, ssq_ref):
    """Per-column sum / sum-of-squares of a (1, tr, L) slab; per-batch partial outputs."""
    @pl.when(pl.program_id(1) == 0)
    def _():
        sum_ref[...] = jnp.zeros_like(sum_ref)
        ssq_ref[...] = jnp.zeros_like(ssq_ref)

    x = x_ref[0].astype(jnp.float32)
    sum_ref[0] += jnp.sum(x, axis=0, keepdims=True)
    ssq_ref[0] += jnp.sum(x * x, axis=0, keepdims=True)


def _bnapply_kernel(x_ref, scale_ref, shift_ref, o_ref, *, relu):
    """y = x*scale + shift (+relu); scale/shift precomputed per column."""
    y = x_ref[...].astype(jnp.float32) * scale_ref[...] + shift_ref[...]
    if relu:
        y = jnp.maximum(y, 0.0)
    o_ref[...] = y.astype(o_ref.dtype)


def _bnconv_kernel(x_ref, scale_ref, shift_ref, t_ref, y_ref, sum_ref, ssq_ref,
                   crow_ref, cstrip_ref, *, th, s_steps, wcout, relu):
    """One grid step of the fused [apply previous BN (+relu)] -> conv3x3 -> stats pass.

    Grid = (batch [parallel], strip-step s in [0, s_steps] [arbitrary]).
    Step s computes output strip q = s-1 (step 0 only primes the carry scratch):

      nw (th+2, W*Cin) = [ carried row | carried strip (q) | first row of current strip ]
      rows outside the image are zeroed *after* normalization (conv pads the normalized x)
      y[q*th + j, :]   = sum_kh  norm(nw)[j + kh, :] @ T[kh]      (block-Toeplitz weights)

    x_ref     : (1, th, W*Cin)   current raw input strip (strip min(s, s_steps-1))
    scale_ref : (1, W*Cin)       previous-BN per-channel scale, tiled over W
    shift_ref : (1, W*Cin)       previous-BN per-channel shift, tiled over W
    t_ref     : (3, W*Cin, W*Cout) bf16 block-Toeplitz weights (one per kernel row kh)
    y_ref     : (1, th, W*Cout)  output strip q (lane-dense)
    sum_ref   : (1, 1, W*Cout)   per-batch column sums of the conv output
    ssq_ref   : (1, 1, W*Cout)   per-batch column sums of squares
    crow_ref  : (1, W*Cin)       carry: raw input row  q*th - 1
    cstrip_ref: (th, W*Cin)      carry: raw input strip q
    """
    s = pl.program_id(1)
    last = s_steps                      # grid axis 1 has s_steps + 1 steps

    @pl.when(s == 0)
    def _():
        sum_ref[...] = jnp.zeros_like(sum_ref)
        ssq_ref[...] = jnp.zeros_like(ssq_ref)

    @pl.when(s > 0)
    def _compute():
        scale = scale_ref[...]
        shift = shift_ref[...]
        nxt = x_ref[0, pl.ds(0, 1), :]                       # first row of the next strip
        nw = jnp.concatenate([crow_ref[...], cstrip_ref[...], nxt], axis=0)  # (th+2, W*Cin)
        nw = nw * scale + shift
        if relu:
            nw = jnp.maximum(nw, 0.0)
        # Halo rows outside the image must be zero *after* normalization
        # (the conv zero-pads its input, which is the normalized tensor).
        ridx = lax.broadcasted_iota(jnp.int32, (th + 2, 1), 0)
        oob = ((ridx == 0) & (s == 1)) | ((ridx == th + 1) & (s == last))
        nw = jnp.where(oob, 0.0, nw)

        acc = jnp.zeros((th, wcout), jnp.float32)
        for kh in range(3):                                  # 3 accumulating MXU matmuls
            acc += jnp.dot(nw[kh:kh + th, :].astype(jnp.bfloat16), t_ref[kh],
                           preferred_element_type=jnp.float32)

        y_ref[0] = acc.astype(y_ref.dtype)
        sum_ref[0] += jnp.sum(acc, axis=0, keepdims=True)
        ssq_ref[0] += jnp.sum(acc * acc, axis=0, keepdims=True)

    @pl.when(s < last)
    def _carry():
        # Carry the current strip (and its predecessor's last row) to the next step.
        prev_last = cstrip_ref[pl.ds(th - 1, 1), :]
        crow_ref[...] = jnp.where(s == 0, jnp.zeros_like(prev_last), prev_last)
        cstrip_ref[...] = x_ref[0]


# --------------------------------------------------------------------------
# Pallas wrappers
# --------------------------------------------------------------------------

def column_stats(x3d, *, vmem_cap):
    """x3d: (N, R, L). Per-column sum / sumsq (reduced over N and R).
    Per-batch partials keep the batch grid axis megacore-parallel."""
    n, r, l = x3d.shape
    tr = _row_tile(r, l, x3d.dtype.itemsize, budget_bytes=max(1 << 20, vmem_cap // 32))
    s, q = pl.pallas_call(
        _colstats_kernel,
        out_shape=(jax.ShapeDtypeStruct((n, 1, l), jnp.float32),
                   jax.ShapeDtypeStruct((n, 1, l), jnp.float32)),
        grid=(n, r // tr),
        in_specs=[pl.BlockSpec((1, tr, l), lambda b, i: (b, i, 0))],
        out_specs=(pl.BlockSpec((1, 1, l), lambda b, i: (b, 0, 0)),
                   pl.BlockSpec((1, 1, l), lambda b, i: (b, 0, 0))),
        compiler_params=pltpu.CompilerParams(
            dimension_semantics=("parallel", "arbitrary"),
            vmem_limit_bytes=min(vmem_cap // 4, 32 * 1024 * 1024)),
    )(x3d)
    return jnp.sum(s[:, 0, :], axis=0), jnp.sum(q[:, 0, :], axis=0)


def bn_apply(x2d, scale_cols, shift_cols, *, relu, vmem_cap):
    r, l = x2d.shape
    tr = _row_tile(r, l, x2d.dtype.itemsize, budget_bytes=max(1 << 20, vmem_cap // 24))
    return pl.pallas_call(
        functools.partial(_bnapply_kernel, relu=relu),
        out_shape=jax.ShapeDtypeStruct((r, l), x2d.dtype),
        grid=(r // tr,),
        in_specs=[pl.BlockSpec((tr, l), lambda i: (i, 0)),
                  pl.BlockSpec((1, l), lambda i: (0, 0)),
                  pl.BlockSpec((1, l), lambda i: (0, 0))],
        out_specs=pl.BlockSpec((tr, l), lambda i: (i, 0)),
        compiler_params=pltpu.CompilerParams(
            dimension_semantics=("parallel",),
            vmem_limit_bytes=min(vmem_cap // 2, max(32 * 1024 * 1024, 6 * tr * l * 4))),
    )(x2d, scale_cols, shift_cols)


def _make_toeplitz(w_hwio, width):
    """(3,3,Cin,Cout) conv weights -> (3, W*Cin, W*Cout) bf16 block-Toeplitz matrices.

    T[kh, wi*Cin+ci, wo*Cout+co] = w[kh, wi-wo+1, ci, co] (0 elsewhere): the kw taps and
    the 'same' width padding are folded into the matrix, so the kernel lhs stays lane-dense.
    """
    _, _, cin, cout = w_hwio.shape
    wi = jnp.arange(width)[:, None]
    wo = jnp.arange(width)[None, :]
    kw = wi - wo + 1                                     # (W, W)
    valid = (kw >= 0) & (kw <= 2)
    kw_c = jnp.clip(kw, 0, 2)
    blk = w_hwio[:, kw_c]                                # (3, W, W, Cin, Cout)  [kh, wi, wo, ci, co]
    blk = jnp.where(valid[None, :, :, None, None], blk, 0.0)
    t = blk.transpose(0, 1, 3, 2, 4).reshape(3, width * cin, width * cout)
    return t.astype(jnp.bfloat16)


def bn_conv_stats(x3d, scale_c, shift_c, w_hwio, *, relu, max_strip_rows, vmem_cap):
    """x3d: (N, H, W*Cin) f32. Fused [BN(+relu) -> conv3x3 -> per-batch stats] pass.
    Returns (y (N, H, W*Cout) f32, col_sum (W*Cout,), col_ssq (W*Cout,))."""
    n, h, wcin = x3d.shape
    cin, cout = w_hwio.shape[2], w_hwio.shape[3]
    width = wcin // cin
    wcout = width * cout

    t = _make_toeplitz(w_hwio, width)                    # (3, W*Cin, W*Cout) bf16
    t_bytes = 3 * wcin * wcout * 2
    if t_bytes > vmem_cap // 3:
        # TODO(synk): tile the width axis (per-W-tile Toeplitz blocks) for very wide images.
        raise NotImplementedError("block-Toeplitz conv weights exceed the VMEM budget")

    # Strip rows: bounded by max_strip_rows and by a VMEM budget for strips + temporaries.
    bytes_per_row = wcin * 4 * 5 + wcout * 4 * 4
    th = _pick_tile(h, max(8, min(max_strip_rows,
                                  (vmem_cap // 6) // max(1, bytes_per_row))))
    s_steps = h // th

    scale_cols = jnp.tile(scale_c.astype(jnp.float32), width).reshape(1, wcin)
    shift_cols = jnp.tile(shift_c.astype(jnp.float32), width).reshape(1, wcin)

    # Per-generation VMEM limit derived from the actual block + temporary footprint.
    est = (2 * th * (wcin + wcout) * 4 + 2 * t_bytes + (th + 1) * wcin * 4
           + (th + 2) * wcin * 4 + 2 * th * wcout * 4 + 4 * wcout * 4)
    vmem_limit = int(min(max(32 * 1024 * 1024, 2 * est), 0.7 * vmem_cap))

    kernel = functools.partial(_bnconv_kernel, th=th, s_steps=s_steps,
                               wcout=wcout, relu=relu)
    y, cs, cq = pl.pallas_call(
        kernel,
        out_shape=(jax.ShapeDtypeStruct((n, h, wcout), jnp.float32),
                   jax.ShapeDtypeStruct((n, 1, wcout), jnp.float32),
                   jax.ShapeDtypeStruct((n, 1, wcout), jnp.float32)),
        grid=(n, s_steps + 1),                           # +1: step 0 primes the carry
        in_specs=[
            pl.BlockSpec((1, th, wcin), lambda b, s: (b, jnp.minimum(s, s_steps - 1), 0)),
            pl.BlockSpec((1, wcin), lambda b, s: (0, 0)),
            pl.BlockSpec((1, wcin), lambda b, s: (0, 0)),
            pl.BlockSpec((3, wcin, wcout), lambda b, s: (0, 0, 0)),
        ],
        out_specs=(
            pl.BlockSpec((1, th, wcout), lambda b, s: (b, jnp.maximum(s - 1, 0), 0)),
            pl.BlockSpec((1, 1, wcout), lambda b, s: (b, 0, 0)),
            pl.BlockSpec((1, 1, wcout), lambda b, s: (b, 0, 0)),
        ),
        scratch_shapes=[pltpu.VMEM((1, wcin), jnp.float32),     # carried halo row
                        pltpu.VMEM((th, wcin), jnp.float32)],   # carried previous strip
        compiler_params=pltpu.CompilerParams(
            # batch axis only feeds per-batch blocks -> megacore-parallel on v7x;
            # the strip axis carries the halo/stats state -> arbitrary.
            dimension_semantics=("parallel", "arbitrary"),
            vmem_limit_bytes=vmem_limit),
    )(x3d, scale_cols, shift_cols, t)
    return y, jnp.sum(cs[:, 0, :], axis=0), jnp.sum(cq[:, 0, :], axis=0)


def _finalize_bn(col_sum, col_ssq, count, channels, gamma, beta, eps=1e-5):
    """Fold per-(W*C)-column sums into per-channel batch stats -> affine (scale, shift)."""
    s = col_sum.reshape(-1, channels).sum(axis=0)
    q = col_ssq.reshape(-1, channels).sum(axis=0)
    mean = s / count
    # TODO(synk): E[x^2]-E[x]^2 in f32 can cancel for very large N*H*W; a per-strip
    #             (count, mean, M2) combine would be more robust.
    var = jnp.maximum(q / count - mean * mean, 0.0)      # biased variance (training-mode BN)
    scale = gamma * lax.rsqrt(var + eps)
    shift = beta - mean * scale
    return scale, shift


# --------------------------------------------------------------------------
# Glue: bilinear upsample (align_corners=True), params, forward
# --------------------------------------------------------------------------

def bilinear_upsample_x2_nhwc(x):
    """nn.Upsample(scale_factor=2, mode='bilinear', align_corners=True), NHWC."""
    n, h, w, c = x.shape
    ho, wo = 2 * h, 2 * w
    ys = jnp.arange(ho, dtype=jnp.float32) * ((h - 1) / (ho - 1))
    xs = jnp.arange(wo, dtype=jnp.float32) * ((w - 1) / (wo - 1))
    y0 = jnp.floor(ys).astype(jnp.int32)
    y1 = jnp.minimum(y0 + 1, h - 1)
    x0 = jnp.floor(xs).astype(jnp.int32)
    x1 = jnp.minimum(x0 + 1, w - 1)
    wy = (ys - y0.astype(jnp.float32))[None, :, None, None]
    wx = (xs - x0.astype(jnp.float32))[None, None, :, None]
    top, bot = x[:, y0, :, :], x[:, y1, :, :]
    v = top * (1.0 - wy) + bot * wy
    return v[:, :, x0, :] * (1.0 - wx) + v[:, :, x1, :] * wx


def init_up_params(key, in_channels, out_channels, n=1):
    params = {}
    key, kg, kb = jax.random.split(key, 3)
    params["bn0_gamma"] = jax.random.uniform(kg, (in_channels,), jnp.float32, 0.5, 1.5)
    params["bn0_beta"] = jax.random.normal(kb, (in_channels,), jnp.float32) * 0.1
    blocks = []
    cin = in_channels
    for _ in range(n):
        key, kw, kg, kb = jax.random.split(key, 4)
        wstd = (2.0 / (cin * 9)) ** 0.5
        blocks.append({
            "conv_w": jax.random.normal(kw, (3, 3, cin, out_channels), jnp.float32) * wstd,
            "bn_gamma": jax.random.uniform(kg, (out_channels,), jnp.float32, 0.5, 1.5),
            "bn_beta": jax.random.normal(kb, (out_channels,), jnp.float32) * 0.1,
        })
        cin = out_channels
    params["blocks"] = blocks
    return params


def up_forward_nhwc(params, x1, x2, *, activation="", max_strip_rows=256):
    """x1: (N, H/2, W/2, C1), x2: (N, H, W, C2) NHWC; returns (N, H, W, Cout) NHWC."""
    x1 = bilinear_upsample_x2_nhwc(x1)
    dy = x2.shape[1] - x1.shape[1]
    dx = x2.shape[2] - x1.shape[2]
    # TODO(synk): negative diff (x1 larger than x2) unhandled, as in the reference module.
    x1 = jnp.pad(x1, ((0, 0), (dy // 2, dy - dy // 2), (dx // 2, dx - dx // 2), (0, 0)))
    x = jnp.concatenate([x1, x2], axis=-1)               # (N, H, W, Cin); XLA fuses pad+concat
    n, h, w, cin = x.shape
    relu = activation == "relu"                          # TODO(synk): 'prelu' not implemented
    vmem_cap = _vmem_capacity_bytes()

    x_cols = x.reshape(n, h, w * cin)                    # lane-dense slab view (free reshape)

    # BN0 batch statistics: one tiled read of the concat tensor (per-batch partials).
    cs, cq = column_stats(x_cols, vmem_cap=vmem_cap)
    scale, shift = _finalize_bn(cs, cq, n * h * w, cin,
                                params["bn0_gamma"], params["bn0_beta"])

    cur, cur_c = x_cols, cin
    for blk in params["blocks"]:
        # fused: apply previous BN (+relu) -> conv3x3 (Toeplitz matmuls) -> output stats
        cur, cs, cq = bn_conv_stats(cur, scale, shift, blk["conv_w"], relu=relu,
                                    max_strip_rows=max_strip_rows, vmem_cap=vmem_cap)
        cur_c = blk["conv_w"].shape[3]
        scale, shift = _finalize_bn(cs, cq, n * h * w, cur_c,
                                    blk["bn_gamma"], blk["bn_beta"])

    # Final BN (+relu) of the last block: lane-dense normalize pass.
    out = bn_apply(cur.reshape(n * h, w * cur_c),
                   jnp.tile(scale, w).reshape(1, w * cur_c),
                   jnp.tile(shift, w).reshape(1, w * cur_c),
                   relu=relu, vmem_cap=vmem_cap)
    return out.reshape(n, h, w, cur_c)


def up_forward(params, x1_nchw, x2_nchw, *, activation="", max_strip_rows=256):
    """NCHW-in / NCHW-out wrapper matching the PyTorch module interface."""
    x1 = jnp.transpose(x1_nchw, (0, 2, 3, 1))
    x2 = jnp.transpose(x2_nchw, (0, 2, 3, 1))
    y = up_forward_nhwc(params, x1, x2, activation=activation,
                        max_strip_rows=max_strip_rows)
    return jnp.transpose(y, (0, 3, 1, 2))


# --------------------------------------------------------------------------
# Pure-JAX reference (f32 conv) for a correctness sanity check
# --------------------------------------------------------------------------

def _reference_nhwc(params, x1, x2, *, activation=""):
    x1 = bilinear_upsample_x2_nhwc(x1)
    dy = x2.shape[1] - x1.shape[1]
    dx = x2.shape[2] - x1.shape[2]
    x1 = jnp.pad(x1, ((0, 0), (dy // 2, dy - dy // 2), (dx // 2, dx - dx // 2), (0, 0)))
    out = jnp.concatenate([x1, x2], axis=-1)

    def bn(v, g, b):
        m = v.mean(axis=(0, 1, 2))
        var = v.var(axis=(0, 1, 2))
        return (v - m) * lax.rsqrt(var + 1e-5) * g + b

    def act(v):
        return jnp.maximum(v, 0.0) if activation == "relu" else v

    out = act(bn(out, params["bn0_gamma"], params["bn0_beta"]))
    for blk in params["blocks"]:
        out = lax.conv_general_dilated(
            out, blk["conv_w"], window_strides=(1, 1), padding="SAME",
            dimension_numbers=("NHWC", "HWIO", "NHWC"))
        out = act(bn(out, blk["bn_gamma"], blk["bn_beta"]))
    return out


# --------------------------------------------------------------------------

if __name__ == "__main__":
    key = jax.random.PRNGKey(0)
    k1, k2, kp = jax.random.split(key, 3)

    # x1: deeper-layer feature map (half resolution), x2: skip connection (NCHW).
    x1 = jax.random.normal(k1, (2, 4, 8, 8), jnp.float32)
    x2 = jax.random.normal(k2, (2, 4, 16, 16), jnp.float32)

    in_channels = x1.shape[1] + x2.shape[1]              # channels after the concat = 8
    out_channels = 8

    fwd = jax.jit(up_forward, static_argnames=("activation", "max_strip_rows"))
    x1_nhwc = jnp.transpose(x1, (0, 2, 3, 1))
    x2_nhwc = jnp.transpose(x2, (0, 2, 3, 1))

    # 1) Module defaults: n=1, no activation, single-strip path (th == H).
    params = init_up_params(kp, in_channels, out_channels, n=1)
    y = fwd(params, x1, x2, activation="")
    jax.block_until_ready(y)
    assert y.shape == (2, out_channels, 16, 16)
    assert bool(jnp.all(jnp.isfinite(y)))
    ref = jnp.transpose(_reference_nhwc(params, x1_nhwc, x2_nhwc, activation=""),
                        (0, 3, 1, 2))
    assert float(jnp.max(jnp.abs(y - ref))) < 0.1        # bf16 conv operands vs f32 reference

    # 2) relu activation, two BasicBlocks, forced 2 H-strips (exercises the carry/halo path).
    params2 = init_up_params(kp, in_channels, out_channels, n=2)
    y2 = fwd(params2, x1, x2, activation="relu", max_strip_rows=8)
    jax.block_until_ready(y2)
    assert y2.shape == (2, out_channels, 16, 16)
    assert bool(jnp.all(jnp.isfinite(y2)))
    ref2 = jnp.transpose(_reference_nhwc(params2, x1_nhwc, x2_nhwc, activation="relu"),
                         (0, 3, 1, 2))
    assert float(jnp.max(jnp.abs(y2 - ref2))) < 0.1

    print("KERNEL_OK")
</pallas_src>

<mosaic_0001>
module attributes {stable_mosaic.version = 11 : i64} {
  func.func @_colstats_kernel(%arg0: i32, %arg1: i32, %arg2: memref<1x16x128xf32, #tpu.memory_space<vmem>>, %arg3: memref<1x1x128xf32, #tpu.memory_space<vmem>>, %arg4: memref<1x1x128xf32, #tpu.memory_space<vmem>>) attributes {dimension_semantics = [#tpu.dimension_semantics<parallel>, #tpu.dimension_semantics<arbitrary>], iteration_bounds = array<i64: 2, 1>, scalar_prefetch = 0 : i64, scratch_operands = 0 : i64, tpu.core_type = #tpu.core_type<tc>, window_params = [{transform_indices = @transform_0, window_bounds = array<i64: 1, 16, 128>}, {transform_indices = @transform_1, window_bounds = array<i64: 1, 1, 128>}, {transform_indices = @transform_2, window_bounds = array<i64: 1, 1, 128>}]} {
    %c0_i32 = arith.constant 0 : i32
    %0 = arith.cmpi eq, %arg1, %c0_i32 : i32
    %1 = arith.extui %0 : i1 to i32
    %c0_i32_0 = arith.constant 0 : i32
    %2 = arith.cmpi ne, %1, %c0_i32_0 : i32
    scf.if %2 {
      %cst_16 = arith.constant 0.000000e+00 : f32
      %22 = vector.broadcast %cst_16 : f32 to vector<1x1x128xf32>
      %c0_17 = arith.constant 0 : index
      %c0_18 = arith.constant 0 : index
      %c0_19 = arith.constant 0 : index
      %23 = vector.load %arg3[%c0_17, %c0_18, %c0_19] : memref<1x1x128xf32, #tpu.memory_space<vmem>>, vector<1x1x128xf32>
      tpu.vector_store %arg3[%c0_17, %c0_18, %c0_19], %22 {strides = array<i32>} : memref<1x1x128xf32, #tpu.memory_space<vmem>>, vector<1x1x128xf32>,
      %cst_20 = arith.constant 0.000000e+00 : f32
      %24 = vector.broadcast %cst_20 : f32 to vector<1x1x128xf32>
      %c0_21 = arith.constant 0 : index
      %c0_22 = arith.constant 0 : index
      %c0_23 = arith.constant 0 : index
      %25 = vector.load %arg4[%c0_21, %c0_22, %c0_23] : memref<1x1x128xf32, #tpu.memory_space<vmem>>, vector<1x1x128xf32>
      tpu.vector_store %arg4[%c0_21, %c0_22, %c0_23], %24 {strides = array<i32>} : memref<1x1x128xf32, #tpu.memory_space<vmem>>, vector<1x1x128xf32>,
    } else {
    }
    %c0 = arith.constant 0 : index
    %c0_1 = arith.constant 0 : index
    %c0_2 = arith.constant 0 : index
    %3 = vector.load %arg2[%c0, %c0_1, %c0_2] : memref<1x16x128xf32, #tpu.memory_space<vmem>>, vector<1x16x128xf32>
    %4 = vector.shape_cast %3 : vector<1x16x128xf32> to vector<16x128xf32>
    %c0_3 = arith.constant 0 : index
    %c0_4 = arith.constant 0 : index
    %c0_5 = arith.constant 0 : index
    %5 = vector.load %arg3[%c0_3, %c0_4, %c0_5] : memref<1x1x128xf32, #tpu.memory_space<vmem>>, vector<1x1x128xf32>
    %6 = vector.shape_cast %5 : vector<1x1x128xf32> to vector<1x128xf32>
    %cst = arith.constant dense<0.000000e+00> : vector<128xf32>
    %7 = vector.multi_reduction <add>, %4, %cst [0] : vector<16x128xf32> to vector<128xf32>
    %8 = vector.shape_cast %7 : vector<128xf32> to vector<1x128xf32>
    %9 = arith.addf %6, %8 : vector<1x128xf32>
    %c0_6 = arith.constant 0 : index
    %c0_7 = arith.constant 0 : index
    %c0_8 = arith.constant 0 : index
    %10 = vector.load %arg3[%c0_6, %c0_7, %c0_8] : memref<1x1x128xf32, #tpu.memory_space<vmem>>, vector<1x1x128xf32>
    %11 = vector.shape_cast %10 : vector<1x1x128xf32> to vector<1x128xf32>
    %12 = vector.shape_cast %9 : vector<1x128xf32> to vector<1x1x128xf32>
    tpu.vector_store %arg3[%c0_6, %c0_7, %c0_8], %12 {strides = array<i32>} : memref<1x1x128xf32, #tpu.memory_space<vmem>>, vector<1x1x128xf32>,
    %c0_9 = arith.constant 0 : index
    %c0_10 = arith.constant 0 : index
    %c0_11 = arith.constant 0 : index
    %13 = vector.load %arg4[%c0_9, %c0_10, %c0_11] : memref<1x1x128xf32, #tpu.memory_space<vmem>>, vector<1x1x128xf32>
    %14 = vector.shape_cast %13 : vector<1x1x128xf32> to vector<1x128xf32>
    %15 = arith.mulf %4, %4 : vector<16x128xf32>
    %cst_12 = arith.constant dense<0.000000e+00> : vector<128xf32>
    %16 = vector.multi_reduction <add>, %15, %cst_12 [0] : vector<16x128xf32> to vector<128xf32>
    %17 = vector.shape_cast %16 : vector<128xf32> to vector<1x128xf32>
    %18 = arith.addf %14, %17 : vector<1x128xf32>
    %c0_13 = arith.constant 0 : index
    %c0_14 = arith.constant 0 : index
    %c0_15 = arith.constant 0 : index
    %19 = vector.load %arg4[%c0_13, %c0_14, %c0_15] : memref<1x1x128xf32, #tpu.memory_space<vmem>>, vector<1x1x128xf32>
    %20 = vector.shape_cast %19 : vector<1x1x128xf32> to vector<1x128xf32>
    %21 = vector.shape_cast %18 : vector<1x128xf32> to vector<1x1x128xf32>
    tpu.vector_store %arg4[%c0_13, %c0_14, %c0_15], %21 {strides = array<i32>} : memref<1x1x128xf32, #tpu.memory_space<vmem>>, vector<1x1x128xf32>,
    return
  }
  func.func @transform_0(%arg0: i32, %arg1: i32) -> (i32, i32, i32) {
    %c0_i32 = arith.constant 0 : i32
    %c0_i32_0 = arith.constant 0 : i32
    return %arg0, %arg1, %c0_i32 : i32, i32, i32
  }
  func.func @transform_1(%arg0: i32, %arg1: i32) -> (i32, i32, i32) {
    %c0_i32 = arith.constant 0 : i32
    %c0_i32_0 = arith.constant 0 : i32
    %c0_i32_1 = arith.constant 0 : i32
    return %arg0, %c0_i32, %c0_i32_0 : i32, i32, i32
  }
  func.func @transform_2(%arg0: i32, %arg1: i32) -> (i32, i32, i32) {
    %c0_i32 = arith.constant 0 : i32
    %c0_i32_0 = arith.constant 0 : i32
    %c0_i32_1 = arith.constant 0 : i32
    return %arg0, %c0_i32, %c0_i32_0 : i32, i32, i32
  }
}

module attributes {stable_mosaic.version = 11 : i64} {
  func.func @_bnconv_kernel(%arg0: i32, %arg1: i32, %arg2: memref<1x16x128xf32, #tpu.memory_space<vmem>>, %arg3: memref<1x128xf32, #tpu.memory_space<vmem>>, %arg4: memref<1x128xf32, #tpu.memory_space<vmem>>, %arg5: memref<3x128x128xbf16, #tpu.memory_space<vmem>>, %arg6: memref<1x16x128xf32, #tpu.memory_space<vmem>>, %arg7: memref<1x1x128xf32, #tpu.memory_space<vmem>>, %arg8: memref<1x1x128xf32, #tpu.memory_space<vmem>>, %arg9: memref<1x128xf32, #tpu.memory_space<vmem>>, %arg10: memref<16x128xf32, #tpu.memory_space<vmem>>) attributes {dimension_semantics = [#tpu.dimension_semantics<parallel>, #tpu.dimension_semantics<arbitrary>], iteration_bounds = array<i64: 2, 2>, scalar_prefetch = 0 : i64, scratch_operands = 2 : i64, tpu.core_type = #tpu.core_type<tc>, window_params = [{transform_indices = @transform_0, window_bounds = array<i64: 1, 16, 128>}, {pipeline_mode = #tpu.pipeline_mode<synchronous>, transform_indices = @transform_1, window_bounds = array<i64: 1, 128>}, {pipeline_mode = #tpu.pipeline_mode<synchronous>, transform_indices = @transform_2, window_bounds = array<i64: 1, 128>}, {pipeline_mode = #tpu.pipeline_mode<synchronous>, transform_indices = @transform_3, window_bounds = array<i64: 3, 128, 128>}, {transform_indices = @transform_4, window_bounds = array<i64: 1, 16, 128>}, {transform_indices = @transform_5, window_bounds = array<i64: 1, 1, 128>}, {transform_indices = @transform_6, window_bounds = array<i64: 1, 1, 128>}]} {
    %c0_i32 = arith.constant 0 : i32
    %0 = arith.cmpi eq, %arg1, %c0_i32 : i32
    %1 = arith.extui %0 : i1 to i32
    %c0_i32_0 = arith.constant 0 : i32
    %2 = arith.cmpi ne, %1, %c0_i32_0 : i32
    scf.if %2 {
      %cst = arith.constant 0.000000e+00 : f32
      %9 = vector.broadcast %cst : f32 to vector<1x1x128xf32>
      %c0 = arith.constant 0 : index
      %c0_4 = arith.constant 0 : index
      %c0_5 = arith.constant 0 : index
      %10 = vector.load %arg7[%c0, %c0_4, %c0_5] : memref<1x1x128xf32, #tpu.memory_space<vmem>>, vector<1x1x128xf32>
      tpu.vector_store %arg7[%c0, %c0_4, %c0_5], %9 {strides = array<i32>} : memref<1x1x128xf32, #tpu.memory_space<vmem>>, vector<1x1x128xf32>,
      %cst_6 = arith.constant 0.000000e+00 : f32
      %11 = vector.broadcast %cst_6 : f32 to vector<1x1x128xf32>
      %c0_7 = arith.constant 0 : index
      %c0_8 = arith.constant 0 : index
      %c0_9 = arith.constant 0 : index
      %12 = vector.load %arg8[%c0_7, %c0_8, %c0_9] : memref<1x1x128xf32, #tpu.memory_space<vmem>>, vector<1x1x128xf32>
      tpu.vector_store %arg8[%c0_7, %c0_8, %c0_9], %11 {strides = array<i32>} : memref<1x1x128xf32, #tpu.memory_space<vmem>>, vector<1x1x128xf32>,
    } else {
    }
    %c0_i32_1 = arith.constant 0 : i32
    %3 = arith.cmpi sgt, %arg1, %c0_i32_1 : i32
    %4 = arith.extui %3 : i1 to i32
    %c0_i32_2 = arith.constant 0 : i32
    %5 = arith.cmpi ne, %4, %c0_i32_2 : i32
    scf.if %5 {
      %c0 = arith.constant 0 : index
      %c0_4 = arith.constant 0 : index
      %9 = vector.load %arg3[%c0, %c0_4] : memref<1x128xf32, #tpu.memory_space<vmem>>, vector<1x128xf32>
      %c0_5 = arith.constant 0 : index
      %c0_6 = arith.constant 0 : index
      %10 = vector.load %arg4[%c0_5, %c0_6] : memref<1x128xf32, #tpu.memory_space<vmem>>, vector<1x128xf32>
      %c0_7 = arith.constant 0 : index
      %c0_8 = arith.constant 0 : index
      %c0_9 = arith.constant 0 : index
      %11 = vector.load %arg2[%c0_7, %c0_8, %c0_9] : memref<1x16x128xf32, #tpu.memory_space<vmem>>, vector<1x1x128xf32>
      %12 = vector.shape_cast %11 : vector<1x1x128xf32> to vector<1x128xf32>
      %c0_10 = arith.constant 0 : index
      %c0_11 = arith.constant 0 : index
      %13 = vector.load %arg9[%c0_10, %c0_11] : memref<1x128xf32, #tpu.memory_space<vmem>>, vector<1x128xf32>
      %c0_12 = arith.constant 0 : index
      %c0_13 = arith.constant 0 : index
      %14 = vector.load %arg10[%c0_12, %c0_13] : memref<16x128xf32, #tpu.memory_space<vmem>>, vector<16x128xf32>
      %15 = tpu.concatenate %13, %14, %12 in 0 : vector<1x128xf32>, vector<16x128xf32>, vector<1x128xf32> -> vector<18x128xf32>
      %16 = vector.broadcast %9 : vector<1x128xf32> to vector<18x128xf32>
      %17 = arith.mulf %15, %16 : vector<18x128xf32>
      %18 = vector.broadcast %10 : vector<1x128xf32> to vector<18x128xf32>
      %19 = arith.addf %17, %18 : vector<18x128xf32>
      %20 = tpu.iota {dimensions = array<i32: 0>} : vector<18x1xi32>
      %c0_i32_14 = arith.constant 0 : i32
      %21 = vector.broadcast %c0_i32_14 : i32 to vector<18x1xi32>
      %22 = arith.cmpi eq, %20, %21 : vector<18x1xi32>
      %c1_i32_15 = arith.constant 1 : i32
      %23 = arith.cmpi eq, %arg1, %c1_i32_15 : i32
      %24 = vector.broadcast %23 : i1 to vector<18x1xi1>
      %25 = arith.andi %22, %24 : vector<18x1xi1>
      %c17_i32 = arith.constant 17 : i32
      %26 = vector.broadcast %c17_i32 : i32 to vector<18x1xi32>
      %27 = arith.cmpi eq, %20, %26 : vector<18x1xi32>
      %c1_i32_16 = arith.constant 1 : i32
      %28 = arith.cmpi eq, %arg1, %c1_i32_16 : i32
      %29 = vector.broadcast %28 : i1 to vector<18x1xi1>
      %30 = arith.andi %27, %29 : vector<18x1xi1>
      %31 = arith.ori %25, %30 : vector<18x1xi1>
      %cst = arith.constant 0.000000e+00 : f32
      %32 = vector.shape_cast %31 : vector<18x1xi1> to vector<18x1xi1>
      %33 = vector.broadcast %32 : vector<18x1xi1> to vector<18x128xi1>
      %34 = vector.broadcast %cst : f32 to vector<18x128xf32>
      %35 = arith.select %33, %34, %19 : vector<18x128xi1>, vector<18x128xf32>
      %cst_17 = arith.constant 0.000000e+00 : f32
      %36 = vector.broadcast %cst_17 : f32 to vector<16x128xf32>
      %37 = vector.extract_strided_slice %35 {offsets = [0, 0], sizes = [16, 128], strides = [1, 1]} : vector<18x128xf32> to vector<16x128xf32>
      %38 = arith.truncf %37 : vector<16x128xf32> to vector<16x128xbf16>
      %c0_18 = arith.constant 0 : index
      %c0_19 = arith.constant 0 : index
      %c0_20 = arith.constant 0 : index
      %39 = vector.load %arg5[%c0_18, %c0_19, %c0_20] : memref<3x128x128xbf16, #tpu.memory_space<vmem>>, vector<1x128x128xbf16>
      %40 = vector.shape_cast %39 : vector<1x128x128xbf16> to vector<128x128xbf16>
      %cst_21 = arith.constant dense<0.000000e+00> : vector<16x128xf32>
      %41 = tpu.matmul %38, %40, %cst_21 {dimension_numbers = #tpu.dot_dimension_numbers<[1], [0], [0], [1], [0, 0, 1, 1], [], []>} : vector<16x128xbf16>, vector<128x128xbf16>, vector<16x128xf32> -> vector<16x128xf32>
      %42 = arith.addf %36, %41 : vector<16x128xf32>
      %43 = vector.extract_strided_slice %35 {offsets = [1, 0], sizes = [16, 128], strides = [1, 1]} : vector<18x128xf32> to vector<16x128xf32>
      %44 = arith.truncf %43 : vector<16x128xf32> to vector<16x128xbf16>
      %c1 = arith.constant 1 : index
      %c0_22 = arith.constant 0 : index
      %c0_23 = arith.constant 0 : index
      %45 = vector.load %arg5[%c1, %c0_22, %c0_23] : memref<3x128x128xbf16, #tpu.memory_space<vmem>>, vector<1x128x128xbf16>
      %46 = vector.shape_cast %45 : vector<1x128x128xbf16> to vector<128x128xbf16>
      %cst_24 = arith.constant dense<0.000000e+00> : vector<16x128xf32>
      %47 = tpu.matmul %44, %46, %cst_24 {dimension_numbers = #tpu.dot_dimension_numbers<[1], [0], [0], [1], [0, 0, 1, 1], [], []>} : vector<16x128xbf16>, vector<128x128xbf16>, vector<16x128xf32> -> vector<16x128xf32>
      %48 = arith.addf %42, %47 : vector<16x128xf32>
      %49 = vector.extract_strided_slice %35 {offsets = [2, 0], sizes = [16, 128], strides = [1, 1]} : vector<18x128xf32> to vector<16x128xf32>
      %50 = arith.truncf %49 : vector<16x128xf32> to vector<16x128xbf16>
      %c2 = arith.constant 2 : index
      %c0_25 = arith.constant 0 : index
      %c0_26 = arith.constant 0 : index
      %51 = vector.load %arg5[%c2, %c0_25, %c0_26] : memref<3x128x128xbf16, #tpu.memory_space<vmem>>, vector<1x128x128xbf16>
      %52 = vector.shape_cast %51 : vector<1x128x128xbf16> to vector<128x128xbf16>
      %cst_27 = arith.constant dense<0.000000e+00> : vector<16x128xf32>
      %53 = tpu.matmul %50, %52, %cst_27 {dimension_numbers = #tpu.dot_dimension_numbers<[1], [0], [0], [1], [0, 0, 1, 1], [], []>} : vector<16x128xbf16>, vector<128x128xbf16>, vector<16x128xf32> -> vector<16x128xf32>
      %54 = arith.addf %48, %53 : vector<16x128xf32>
      %c0_28 = arith.constant 0 : index
      %c0_29 = arith.constant 0 : index
      %c0_30 = arith.constant 0 : index
      %55 = vector.load %arg6[%c0_28, %c0_29, %c0_30] : memref<1x16x128xf32, #tpu.memory_space<vmem>>, vector<1x16x128xf32>
      %56 = vector.shape_cast %55 : vector<1x16x128xf32> to vector<16x128xf32>
      %57 = vector.shape_cast %54 : vector<16x128xf32> to vector<1x16x128xf32>
      tpu.vector_store %arg6[%c0_28, %c0_29, %c0_30], %57 {strides = array<i32>} : memref<1x16x128xf32, #tpu.memory_space<vmem>>, vector<1x16x128xf32>,
      %c0_31 = arith.constant 0 : index
      %c0_32 = arith.constant 0 : index
      %c0_33 = arith.constant 0 : index
      %58 = vector.load %arg7[%c0_31, %c0_32, %c0_33] : memref<1x1x128xf32, #tpu.memory_space<vmem>>, vector<1x1x128xf32>
      %59 = vector.shape_cast %58 : vector<1x1x128xf32> to vector<1x128xf32>
      %cst_34 = arith.constant dense<0.000000e+00> : vector<128xf32>
      %60 = vector.multi_reduction <add>, %54, %cst_34 [0] : vector<16x128xf32> to vector<128xf32>
      %61 = vector.shape_cast %60 : vector<128xf32> to vector<1x128xf32>
      %62 = arith.addf %59, %61 : vector<1x128xf32>
      %c0_35 = arith.constant 0 : index
      %c0_36 = arith.constant 0 : index
      %c0_37 = arith.constant 0 : index
      %63 = vector.load %arg7[%c0_35, %c0_36, %c0_37] : memref<1x1x128xf32, #tpu.memory_space<vmem>>, vector<1x1x128xf32>
      %64 = vector.shape_cast %63 : vector<1x1x128xf32> to vector<1x128xf32>
      %65 = vector.shape_cast %62 : vector<1x128xf32> to vector<1x1x128xf32>
      tpu.vector_store %arg7[%c0_35, %c0_36, %c0_37], %65 {strides = array<i32>} : memref<1x1x128xf32, #tpu.memory_space<vmem>>, vector<1x1x128xf32>,
      %c0_38 = arith.constant 0 : index
      %c0_39 = arith.constant 0 : index
      %c0_40 = arith.constant 0 : index
      %66 = vector.load %arg8[%c0_38, %c0_39, %c0_40] : memref<1x1x128xf32, #tpu.memory_space<vmem>>, vector<1x1x128xf32>
      %67 = vector.shape_cast %66 : vector<1x1x128xf32> to vector<1x128xf32>
      %68 = arith.mulf %54, %54 : vector<16x128xf32>
      %cst_41 = arith.constant dense<0.000000e+00> : vector<128xf32>
      %69 = vector.multi_reduction <add>, %68, %cst_41 [0] : vector<16x128xf32> to vector<128xf32>
      %70 = vector.shape_cast %69 : vector<128xf32> to vector<1x128xf32>
      %71 = arith.addf %67, %70 : vector<1x128xf32>
      %c0_42 = arith.constant 0 : index
      %c0_43 = arith.constant 0 : index
      %c0_44 = arith.constant 0 : index
      %72 = vector.load %arg8[%c0_42, %c0_43, %c0_44] : memref<1x1x128xf32, #tpu.memory_space<vmem>>, vector<1x1x128xf32>
      %73 = vector.shape_cast %72 : vector<1x1x128xf32> to vector<1x128xf32>
      %74 = vector.shape_cast %71 : vector<1x128xf32> to vector<1x1x128xf32>
      tpu.vector_store %arg8[%c0_42, %c0_43, %c0_44], %74 {strides = array<i32>} : memref<1x1x128xf32, #tpu.memory_space<vmem>>, vector<1x1x128xf32>,
    } else {
    }
    %c1_i32 = arith.constant 1 : i32
    %6 = arith.cmpi slt, %arg1, %c1_i32 : i32
    %7 = arith.extui %6 : i1 to i32
    %c0_i32_3 = arith.constant 0 : i32
    %8 = arith.cmpi ne, %7, %c0_i32_3 : i32
    scf.if %8 {
      %c15 = arith.constant 15 : index
      %c0 = arith.constant 0 : index
      %9 = vector.load %arg10[%c15, %c0] : memref<16x128xf32, #tpu.memory_space<vmem>>, vector<1x128xf32>
      %c0_i32_4 = arith.constant 0 : i32
      %10 = arith.cmpi eq, %arg1, %c0_i32_4 : i32
      %cst = arith.constant 0.000000e+00 : f32
      %11 = vector.broadcast %cst : f32 to vector<1x128xf32>
      %12 = arith.select %10, %11, %9 : vector<1x128xf32>
      %c0_5 = arith.constant 0 : index
      %c0_6 = arith.constant 0 : index
      %13 = vector.load %arg9[%c0_5, %c0_6] : memref<1x128xf32, #tpu.memory_space<vmem>>, vector<1x128xf32>
      tpu.vector_store %arg9[%c0_5, %c0_6], %12 {strides = array<i32>} : memref<1x128xf32, #tpu.memory_space<vmem>>, vector<1x128xf32>,
      %c0_7 = arith.constant 0 : index
      %c0_8 = arith.constant 0 : index
      %c0_9 = arith.constant 0 : index
      %14 = vector.load %arg2[%c0_7, %c0_8, %c0_9] : memref<1x16x128xf32, #tpu.memory_space<vmem>>, vector<1x16x128xf32>
      %15 = vector.shape_cast %14 : vector<1x16x128xf32> to vector<16x128xf32>
      %c0_10 = arith.constant 0 : index
      %c0_11 = arith.constant 0 : index
      %16 = vector.load %arg10[%c0_10, %c0_11] : memref<16x128xf32, #tpu.memory_space<vmem>>, vector<16x128xf32>
      tpu.vector_store %arg10[%c0_10, %c0_11], %15 {strides = array<i32>} : memref<16x128xf32, #tpu.memory_space<vmem>>, vector<16x128xf32>,
    } else {
    }
    return
  }
  func.func @transform_0(%arg0: i32, %arg1: i32) -> (i32, i32, i32) {
    %c0_i32 = arith.constant 0 : i32
    %0 = arith.minsi %arg1, %c0_i32 : i32
    %c0_i32_0 = arith.constant 0 : i32
    %c0_i32_1 = arith.constant 0 : i32
    return %arg0, %0, %c0_i32_0 : i32, i32, i32
  }
  func.func @transform_1(%arg0: i32, %arg1: i32) -> (i32, i32) {
    %c0_i32 = arith.constant 0 : i32
    %c0_i32_0 = arith.constant 0 : i32
    %c0_i32_1 = arith.constant 0 : i32
    return %c0_i32, %c0_i32_0 : i32, i32
  }
  func.func @transform_2(%arg0: i32, %arg1: i32) -> (i32, i32) {
    %c0_i32 = arith.constant 0 : i32
    %c0_i32_0 = arith.constant 0 : i32
    %c0_i32_1 = arith.constant 0 : i32
    return %c0_i32, %c0_i32_0 : i32, i32
  }
  func.func @transform_3(%arg0: i32, %arg1: i32) -> (i32, i32, i32) {
    %c0_i32 = arith.constant 0 : i32
    %c0_i32_0 = arith.constant 0 : i32
    %c0_i32_1 = arith.constant 0 : i32
    %c0_i32_2 = arith.constant 0 : i32
    return %c0_i32, %c0_i32_0, %c0_i32_1 : i32, i32, i32
  }
  func.func @transform_4(%arg0: i32, %arg1: i32) -> (i32, i32, i32) {
    %c1_i32 = arith.constant 1 : i32
    %0 = arith.subi %arg1, %c1_i32 : i32
    %c0_i32 = arith.constant 0 : i32
    %1 = arith.maxsi %0, %c0_i32 : i32
    %c0_i32_0 = arith.constant 0 : i32
    %c0_i32_1 = arith.constant 0 : i32
    return %arg0, %1, %c0_i32_0 : i32, i32, i32
  }
  func.func @transform_5(%arg0: i32, %arg1: i32) -> (i32, i32, i32) {
    %c0_i32 = arith.constant 0 : i32
    %c0_i32_0 = arith.constant 0 : i32
    %c0_i32_1 = arith.constant 0 : i32
    return %arg0, %c0_i32, %c0_i32_0 : i32, i32, i32
  }
  func.func @transform_6(%arg0: i32, %arg1: i32) -> (i32, i32, i32) {
    %c0_i32 = arith.constant 0 : i32
    %c0_i32_0 = arith.constant 0 : i32
    %c0_i32_1 = arith.constant 0 : i32
    return %arg0, %c0_i32, %c0_i32_0 : i32, i32, i32
  }
}

module attributes {stable_mosaic.version = 11 : i64} {
  func.func @_bnapply_kernel(%arg0: i32, %arg1: memref<32x128xf32, #tpu.memory_space<vmem>>, %arg2: memref<1x128xf32, #tpu.memory_space<vmem>>, %arg3: memref<1x128xf32, #tpu.memory_space<vmem>>, %arg4: memref<32x128xf32, #tpu.memory_space<vmem>>) attributes {dimension_semantics = [#tpu.dimension_semantics<parallel>], iteration_bounds = array<i64: 1>, scalar_prefetch = 0 : i64, scratch_operands = 0 : i64, tpu.core_type = #tpu.core_type<tc>, window_params = [{transform_indices = @transform_0, window_bounds = array<i64: 32, 128>}, {pipeline_mode = #tpu.pipeline_mode<synchronous>, transform_indices = @transform_1, window_bounds = array<i64: 1, 128>}, {pipeline_mode = #tpu.pipeline_mode<synchronous>, transform_indices = @transform_2, window_bounds = array<i64: 1, 128>}, {transform_indices = @transform_3, window_bounds = array<i64: 32, 128>}]} {
    %c0 = arith.constant 0 : index
    %c0_0 = arith.constant 0 : index
    %0 = vector.load %arg1[%c0, %c0_0] : memref<32x128xf32, #tpu.memory_space<vmem>>, vector<32x128xf32>
    %c0_1 = arith.constant 0 : index
    %c0_2 = arith.constant 0 : index
    %1 = vector.load %arg2[%c0_1, %c0_2] : memref<1x128xf32, #tpu.memory_space<vmem>>, vector<1x128xf32>
    %2 = vector.broadcast %1 : vector<1x128xf32> to vector<32x128xf32>
    %3 = arith.mulf %0, %2 : vector<32x128xf32>
    %c0_3 = arith.constant 0 : index
    %c0_4 = arith.constant 0 : index
    %4 = vector.load %arg3[%c0_3, %c0_4] : memref<1x128xf32, #tpu.memory_space<vmem>>, vector<1x128xf32>
    %5 = vector.broadcast %4 : vector<1x128xf32> to vector<32x128xf32>
    %6 = arith.addf %3, %5 : vector<32x128xf32>
    %c0_5 = arith.constant 0 : index
    %c0_6 = arith.constant 0 : index
    %7 = vector.load %arg4[%c0_5, %c0_6] : memref<32x128xf32, #tpu.memory_space<vmem>>, vector<32x128xf32>
    tpu.vector_store %arg4[%c0_5, %c0_6], %6 {strides = array<i32>} : memref<32x128xf32, #tpu.memory_space<vmem>>, vector<32x128xf32>,
    return
  }
  func.func @transform_0(%arg0: i32) -> (i32, i32) {
    %c0_i32 = arith.constant 0 : i32
    %c0_i32_0 = arith.constant 0 : i32
    return %arg0, %c0_i32 : i32, i32
  }
  func.func @transform_1(%arg0: i32) -> (i32, i32) {
    %c0_i32 = arith.constant 0 : i32
    %c0_i32_0 = arith.constant 0 : i32
    %c0_i32_1 = arith.constant 0 : i32
    return %c0_i32, %c0_i32_0 : i32, i32
  }
  func.func @transform_2(%arg0: i32) -> (i32, i32) {
    %c0_i32 = arith.constant 0 : i32
    %c0_i32_0 = arith.constant 0 : i32
    %c0_i32_1 = arith.constant 0 : i32
    return %c0_i32, %c0_i32_0 : i32, i32
  }
  func.func @transform_3(%arg0: i32) -> (i32, i32) {
    %c0_i32 = arith.constant 0 : i32
    %c0_i32_0 = arith.constant 0 : i32
    return %arg0, %c0_i32 : i32, i32
  }
}

</mosaic_0001>

<llo_original>
// kernel: tile.28
$region0: #{tile.28}
  #allocation0 [shape = 's32[1]{0}', space=sflag, size = 0x4, scoped, tag = 'scoped memory for tile.28']
  %s0 = inlined_call_operand.vmem [shape: f32[8], index: 0, kind: input, shape index: {}]
  %s1 = inlined_call_operand.vmem [shape: f32[16,8], index: 1, kind: output, shape index: {}]
  // Predicated region
  $region2: #{tile.28} parent=0 // pred_check
    _
  $region3: #{tile.28} parent=0 // pred_check_branch
    %3 = sbr.rel (0) target = $region5
  $region4: #{tile.28} parent=0 // pred_region
    _
  $region5: #{tile.28} parent=0 // pred_fallthru
    _
  %v4 = vld [vmem:[%s0] ss:$0 sm:$0xff]
  %5 = vst [vmem:[%s1] sm:$0xff] %v4
  %s6 = scalar_lea.vmem %s1, 8
  %7 = vst [vmem:[%s6] sm:$0xff] %v4

// kernel: tile.29
$region0: #{tile.29}
  %s0 = inlined_call_operand.vmem [shape: f32[16,8], index: 0, kind: input, shape index: {}]
  %s1 = inlined_call_operand.vmem [shape: f32[1,128], index: 1, kind: output, shape index: {}]
  $region1: #{tile.29} parent=0
    #allocation0 [shape = 'u8[4096]{0}', space=vmem, size = 0x1000, scoped, tag = 'scoped mem for output reshape']
    %v2 = vld [vmem:[%s0] sm:$0x1]
    %vm3 = vcmask 64512
    %4 = vst.msk [vmem:[#allocation0] sm:$0x1] %vm3, %v2
    %s5 = scalar_lea.vmem %s0, 15
    %v6 = vld [vmem:[%s5] sm:$0x1]
    %7 = vrot.lane.b32.xlu0 %v6, 120
    %v8 = vpop.permute.xlu0 %7
    %vm9 = vcmask 1048512
    %10 = vst.msk [vmem:[#allocation0] sm:$0x1] %vm9, %v8
    %s11 = scalar_lea.vmem %s0, 14
    %v12 = vld [vmem:[%s11] sm:$0x1]
    %13 = vrot.lane.b32.xlu0 %v12, 112
    %v14 = vpop.permute.xlu0 %13
    %vm15 = vcmask 982912
    %16 = vst.msk [vmem:[#allocation0] sm:$0x1] %vm15, %v14
    %s17 = scalar_lea.vmem %s0, 13
    %v18 = vld [vmem:[%s17] sm:$0x1]
    %19 = vrot.lane.b32.xlu0 %v18, 104
    %v20 = vpop.permute.xlu0 %19
    %vm21 = vcmask 917312
    %22 = vst.msk [vmem:[#allocation0] sm:$0x1] %vm21, %v20
    %s23 = scalar_lea.vmem %s0, 12
    %v24 = vld [vmem:[%s23] sm:$0x1]
    %25 = vrot.lane.b32.xlu0 %v24, 96
    %v26 = vpop.permute.xlu0 %25
    %vm27 = vcmask 851712
    %28 = vst.msk [vmem:[#allocation0] sm:$0x1] %vm27, %v26
    %s29 = scalar_lea.vmem %s0, 11
    %v30 = vld [vmem:[%s29] sm:$0x1]
    %31 = vrot.lane.b32.xlu0 %v30, 88
    %v32 = vpop.permute.xlu0 %31
    %vm33 = vcmask 786112
    %34 = vst.msk [vmem:[#allocation0] sm:$0x1] %vm33, %v32
    %s35 = scalar_lea.vmem %s0, 10
    %v36 = vld [vmem:[%s35] sm:$0x1]
    %37 = vrot.lane.b32.xlu0 %v36, 80
    %v38 = vpop.permute.xlu0 %37
    %vm39 = vcmask 720512
    %40 = vst.msk [vmem:[#allocation0] sm:$0x1] %vm39, %v38
    %s41 = scalar_lea.vmem %s0, 9
    %v42 = vld [vmem:[%s41] sm:$0x1]
    %43 = vrot.lane.b32.xlu0 %v42, 72
    %v44 = vpop.permute.xlu0 %43
    %vm45 = vcmask 654912
    %46 = vst.msk [vmem:[#allocation0] sm:$0x1] %vm45, %v44
    %s47 = scalar_lea.vmem %s0, 8
    %v48 = vld [vmem:[%s47] sm:$0x1]
    %49 = vrot.lane.b32.xlu0 %v48, 64
    %v50 = vpop.permute.xlu0 %49
    %vm51 = vcmask 589312
    %52 = vst.msk [vmem:[#allocation0] sm:$0x1] %vm51, %v50
    %s53 = scalar_lea.vmem %s0, 7
    %v54 = vld [vmem:[%s53] sm:$0x1]
    %55 = vrot.lane.b32.xlu0 %v54, 56
    %v56 = vpop.permute.xlu0 %55
    %vm57 = vcmask 523712
    %58 = vst.msk [vmem:[#allocation0] sm:$0x1] %vm57, %v56
    %s59 = scalar_lea.vmem %s0, 6
    %v60 = vld [vmem:[%s59] sm:$0x1]
    %61 = vrot.lane.b32.xlu0 %v60, 48
    %v62 = vpop.permute.xlu0 %61
    %vm63 = vcmask 458112
    %64 = vst.msk [vmem:[#allocation0] sm:$0x1] %vm63, %v62
    %s65 = scalar_lea.vmem %s0, 5
    %v66 = vld [vmem:[%s65] sm:$0x1]
    %67 = vrot.lane.b32.xlu0 %v66, 40
    %v68 = vpop.permute.xlu0 %67
    %vm69 = vcmask 392512
    %70 = vst.msk [vmem:[#allocation0] sm:$0x1] %vm69, %v68
    %s71 = scalar_lea.vmem %s0, 4
    %v72 = vld [vmem:[%s71] sm:$0x1]
    %73 = vrot.lane.b32.xlu0 %v72, 32
    %v74 = vpop.permute.xlu0 %73
    %vm75 = vcmask 326912
    %76 = vst.msk [vmem:[#allocation0] sm:$0x1] %vm75, %v74
    %s77 = scalar_lea.vmem %s0, 3
    %v78 = vld [vmem:[%s77] sm:$0x1]
    %79 = vrot.lane.b32.xlu0 %v78, 24
    %v80 = vpop.permute.xlu0 %79
    %vm81 = vcmask 261312
    %82 = vst.msk [vmem:[#allocation0] sm:$0x1] %vm81, %v80
    %s83 = scalar_lea.vmem %s0, 2
    %v84 = vld [vmem:[%s83] sm:$0x1]
    %85 = vrot.lane.b32.xlu0 %v84, 16
    %v86 = vpop.permute.xlu0 %85
    %vm87 = vcmask 195712
    %88 = vst.msk [vmem:[#allocation0] sm:$0x1] %vm87, %v86
    %s89 = scalar_lea.vmem %s0, 1
    %v90 = vld [vmem:[%s89] sm:$0x1]
    %91 = vrot.lane.b32.xlu0 %v90, 8
    %v92 = vpop.permute.xlu0 %91
    %vm93 = vcmask 130112
    %94 = vst.msk [vmem:[#allocation0] sm:$0x1] %vm93, %v92
    %s96 = sshllo.u32 0, 1
    %v98 = vld [vmem:[#allocation0] sm:%s96]
    %s99 = sshllo.u32 0, 1
    %100 = vst [vmem:[%s1] sm:%s99] %v98

// kernel: up_forward.3
$region0: #{up_forward.3}
  #allocation0 [shape = 'u32[]', space=smem, size = 0x4, offset = 0x4, fixed_abs, tag = 'smem constant byte address 0x4 - core index']
  #allocation1 [shape = 'u32[144,128]{1,0:T(1,128)}', space=vmem, size = 0x12000, scoped, tag = 'internal scratch']
  %s0 = inlined_call_operand.vmem [shape: f32[2,16,128], index: 0, kind: input, shape index: {}]
  %s1 = inlined_call_operand.vmem [shape: f32[2,1,128], index: 1, kind: output, shape index: {0}]
  %s2 = inlined_call_operand.vmem [shape: f32[2,1,128], index: 2, kind: output, shape index: {1}]
  %3 = xla_tuple %s1, %s2
  %s4 = sld [smem:[#allocation0]]
  $region49: #{up_forward.3} parent=0
    _
  %s6 = ssub.s32 1, %s4
  %s7 = scalar_select 0, %s6, %s4
  loop: start=0, step=1, limit=4
  $region2: #{up_forward.3} parent=0 // loop_pre_header
    _
  $region3: #{up_forward.3} parent=0 // loop_header
    %s9 = sphi 0, %s13
    %p10 = scmp.ge.s32.totalorder %s9, 4
    %s16 = sphi 0, %s28
    %s17 = sphi 0, %s24
    %s18 = sphi 0, %s16
    %s19 = sphi 0, %s17
    %s20 = sphi 0, %s18
    %s21 = sphi 0, %s19
    %s33 = sphi 0, %s35
    %s36 = sphi 0, %s33
    %s37 = sphi 0, %s36
    %s53 = sphi 0, %s37
    %s59 = sphi 0, %s61
    %s62 = sphi 0, %s59
    %s63 = sphi 0, %s62
    %s79 = sphi 0, %s63
    %s85 = sphi 0, %s87
    %s88 = sphi 0, %s85
    %s89 = sphi 0, %s88
    %s105 = sphi 0, %s89
  $region4: #{up_forward.3} parent=0 // loop_header_branch
    %12 = sbr.rel (%p10) target = $region8
  $region5: #{up_forward.3} parent=0 // loop_body
    %s14 = ssub.s32 %s9, 1
    %s15 = ssub.s32 %s9, 2
    %s22 = sadd.s32 1, %s17
    %p23 = scmp.ge.s32.totalorder %s22, 1
    %s24 = scalar_select %p23, 0, %s22
    %s25 = sadd.s32 1, %s16
    %s26 = scalar_select %p23, %s25, %s16
    %p27 = scmp.ge.s32.totalorder %s26, 2
    %s28 = scalar_select %p27, 0, %s26
    %s29 = ssub.s32 %s16, %s28
    %s30 = ssub.s32 %s17, %s24
    %s31 = sor.u32 %s29, %s30
    %p32 = scmp.eq.s32.totalorder %s31, 0
    %s34 = sadd.s32 %s33, 1
    %s35 = scalar_select %p32, %s33, %s34
    %p38 = pneg %p32
    %p39 = scmp.eq.s32.totalorder %s9, 1
    %p40 = por %p38, %p39
    %p41 = scmp.ne.s32.totalorder %s33, %s36
    %p42 = scmp.eq.s32.totalorder %s9, 0
    %p43 = por %p41, %p42
    %p44 = scmp.ne.s32.totalorder %s33, %s36
    %p45 = scmp.eq.s32.totalorder %s14, 1
    %p46 = por %p44, %p45
    %p47 = scmp.ne.s32.totalorder %s36, %s37
    %p48 = scmp.eq.s32.totalorder %s14, 0
    %p49 = por %p47, %p48
    %p50 = scmp.ne.s32.totalorder %s36, %s37
    %p51 = scmp.eq.s32.totalorder %s15, 1
    %p52 = por %p50, %p51
    %p54 = scmp.ne.s32.totalorder %s37, %s53
    %p55 = scmp.eq.s32.totalorder %s15, 0
    %p56 = por %p54, %p55
    %s57 = ssub.s32 %s16, %s28
    %p58 = scmp.eq.s32.totalorder %s57, 0
    %s60 = sadd.s32 %s59, 1
    %s61 = scalar_select %p58, %s59, %s60
    %p64 = pneg %p58
    %p65 = scmp.eq.s32.totalorder %s9, 1
    %p66 = por %p64, %p65
    %p67 = scmp.ne.s32.totalorder %s59, %s62
    %p68 = scmp.eq.s32.totalorder %s9, 0
    %p69 = por %p67, %p68
    %p70 = scmp.ne.s32.totalorder %s59, %s62
    %p71 = scmp.eq.s32.totalorder %s14, 1
    %p72 = por %p70, %p71
    %p73 = scmp.ne.s32.totalorder %s62, %s63
    %p74 = scmp.eq.s32.totalorder %s14, 0
    %p75 = por %p73, %p74
    %p76 = scmp.ne.s32.totalorder %s62, %s63
    %p77 = scmp.eq.s32.totalorder %s15, 1
    %p78 = por %p76, %p77
    %p80 = scmp.ne.s32.totalorder %s63, %s79
    %p81 = scmp.eq.s32.totalorder %s15, 0
    %p82 = por %p80, %p81
    %s83 = ssub.s32 %s16, %s28
    %p84 = scmp.eq.s32.totalorder %s83, 0
    %s86 = sadd.s32 %s85, 1
    %s87 = scalar_select %p84, %s85, %s86
    %p90 = pneg %p84
    %p91 = scmp.eq.s32.totalorder %s9, 1
    %p92 = por %p90, %p91
    %p93 = scmp.ne.s32.totalorder %s85, %s88
    %p94 = scmp.eq.s32.totalorder %s9, 0
    %p95 = por %p93, %p94
    %p96 = scmp.ne.s32.totalorder %s85, %s88
    %p97 = scmp.eq.s32.totalorder %s14, 1
    %p98 = por %p96, %p97
    %p99 = scmp.ne.s32.totalorder %s88, %s89
    %p100 = scmp.eq.s32.totalorder %s14, 0
    %p101 = por %p99, %p100
    %p102 = scmp.ne.s32.totalorder %s88, %s89
    %p103 = scmp.eq.s32.totalorder %s15, 1
    %p104 = por %p102, %p103
    %p106 = scmp.ne.s32.totalorder %s89, %s105
    %p107 = scmp.eq.s32.totalorder %s15, 0
    %p108 = por %p106, %p107
    %p109 = scmp.le.s32.totalorder 1, %s9
    %p110 = scmp.lt.s32.totalorder %s9, 3
    %p111 = pnand %p109, %p110
    %p112 = pneg %p111
    // Predicated region
    $region9: #{up_forward.3} parent=5 // pred_check
      _
    $region10: #{up_forward.3} parent=5 // pred_check_branch
      %114 = sbr.rel (%p111) target = $region12
    $region11: #{up_forward.3} parent=5 // pred_region
      %s115 = ssub.s32 %s9, 1
    $region12: #{up_forward.3} parent=5 // pred_fallthru
      _
    %p116 = scmp.lt.s32.totalorder %s9, 2
    // Predicated region
    $region13: #{up_forward.3} parent=5 // pred_check
      %p117 = pneg %p116
    $region14: #{up_forward.3} parent=5 // pred_check_branch
      %119 = sbr.rel (%p117) target = $region16
    $region15: #{up_forward.3} parent=5 // pred_region
      // Predicated region
      $region17: #{up_forward.3} parent=15 // pred_check
        %p120 = pneg %p43
      $region18: #{up_forward.3} parent=15 // pred_check_branch
        %122 = sbr.rel (%p120) target = $region20
      $region19: #{up_forward.3} parent=15 // pred_region
        %s123 = smul.u32 2, %s17
        %p124 = scmp.lt.s32.totalorder %s16, 1
        %s125 = scalar_select %p124, %s16, 1
        %p126 = scmp.lt.s32.totalorder %s123, 1
        %s127 = scalar_select %p126, %s123, 1
        %s128 = smul.addr %s125, 2
        %s129 = sadd.s32 %s127, %s128
        %s130 = smul.addr %s129, 8
        %s131 = scalar_lea.vmem %s0, %s130
        %s132 = smul.u32 2, %s17
      $region20: #{up_forward.3} parent=15 // pred_fallthru
        _
    $region16: #{up_forward.3} parent=5 // pred_fallthru
      _
    %p133 = scmp.le.s32.totalorder 1, %s9
    %p134 = scmp.lt.s32.totalorder %s9, 3
    %p135 = pnand %p133, %p134
    %p136 = pneg %p135
    // Predicated region
    $region21: #{up_forward.3} parent=5 // pred_check
      _
    $region22: #{up_forward.3} parent=5 // pred_check_branch
      %138 = sbr.rel (%p135) target = $region24
    $region23: #{up_forward.3} parent=5 // pred_region
      %s139 = ssub.s32 %s9, 1
      %s140 = smul.u32 2, %s19
      %p141 = scmp.lt.s32.totalorder %s18, 1
      %s142 = scalar_select %p141, %s18, 1
      %p143 = scmp.lt.s32.totalorder %s140, 1
      %s144 = scalar_select %p143, %s140, 1
      %s145 = smul.addr %s142, 2
      %s146 = sadd.s32 %s144, %s145
      %s147 = smul.addr %s146, 8
      %s148 = scalar_lea.vmem %s0, %s147
      %p149 = pneg %p49
      %p150 = pneg %p46
      %p151 = pneg %p75
      %p152 = pneg %p72
      %p153 = scmp.lt.s32.totalorder %s18, 1
      %s154 = scalar_select %p153, %s18, 1
      %s155 = scalar_lea.vmem %s1, %s154
      %p156 = pneg %p101
      %p157 = pneg %p98
      %p158 = scmp.lt.s32.totalorder %s18, 1
      %s159 = scalar_select %p158, %s18, 1
      %s160 = scalar_lea.vmem %s2, %s159
      %s161 = smul.u32 2, %s19
      %p162 = scmp.lt.s32.totalorder %s18, 1
      %s163 = scalar_select %p162, %s18, 1
      %p164 = scmp.lt.s32.totalorder %s161, 1
      %s165 = scalar_select %p164, %s161, 1
      %s166 = smul.addr %s163, 2
      %s167 = sadd.s32 %s165, %s166
      %s168 = smul.addr %s167, 8
      %s169 = scalar_lea.vmem %s0, %s168
      %s170 = smul.u32 2, %s19
      %p171 = scmp.lt.s32.totalorder %s18, 1
      %s172 = scalar_select %p171, %s18, 1
      %s173 = scalar_lea.vmem %s1, %s172
      %p174 = scmp.lt.s32.totalorder %s18, 1
      %s175 = scalar_select %p174, %s18, 1
      %s176 = scalar_lea.vmem %s2, %s175
      %p177 = scmp.eq.s32.totalorder %s19, 0
      // Predicated region
      $region25: #{up_forward.3} parent=23 // pred_check
        %p178 = pneg %p177
      $region26: #{up_forward.3} parent=23 // pred_check_branch
        %180 = sbr.rel (%p178) target = $region28
      $region27: #{up_forward.3} parent=23 // pred_region
        %181 = vst [vmem:[%s173] sm:$0x1] 0.0
        %182 = vst [vmem:[%s176] sm:$0x1] 0.0
      $region28: #{up_forward.3} parent=23 // pred_fallthru
        _
      %v183 = vld [vmem:[%s169] sm:$0xff]
      %v184 = vld [vmem:[%s169 + $0x8] sm:$0xff]
      %v185 = vld [vmem:[%s173] sm:$0x1]
      %v186 = vadd.f32 %v183, %v184
      %v187 = vrot.slane %v186, 4
      %v188 = vadd.f32 %v186, %v187
      %v189 = vrot.slane %v188, 2
      %v190 = vadd.f32 %v188, %v189
      %v191 = vrot.slane %v190, 1
      %v192 = vadd.f32 %v190, %v191
      %v193 = vadd.f32 %v185, %v192
      %194 = vst [vmem:[%s173] sm:$0x1] %v193
      %v195 = vld [vmem:[%s176] sm:$0x1]
      %v196 = vmul.f32 %v183, %v183
      %v197 = vmul.f32 %v184, %v184
      %v198 = vadd.f32 %v196, %v197
      %v199 = vrot.slane %v198, 4
      %v200 = vadd.f32 %v198, %v199
      %v201 = vrot.slane %v200, 2
      %v202 = vadd.f32 %v200, %v201
      %v203 = vrot.slane %v202, 1
      %v204 = vadd.f32 %v202, %v203
      %v205 = vadd.f32 %v195, %v204
      %206 = vst [vmem:[%s176] sm:$0x1] %v205
      %p207 = scmp.lt.s32.totalorder %s18, 1
      %s208 = scalar_select %p207, %s18, 1
      %s209 = scalar_lea.vmem %s1, %s208
      %p210 = scmp.lt.s32.totalorder %s18, 1
      %s211 = scalar_select %p210, %s18, 1
      %s212 = scalar_lea.vmem %s2, %s211
      // Predicated region
      $region29: #{up_forward.3} parent=23 // pred_check
        %p213 = pneg %p72
      $region30: #{up_forward.3} parent=23 // pred_check_branch
        %215 = sbr.rel (%p213) target = $region32
      $region31: #{up_forward.3} parent=23 // pred_region
        _
      $region32: #{up_forward.3} parent=23 // pred_fallthru
        _
      // Predicated region
      $region33: #{up_forward.3} parent=23 // pred_check
        %p216 = pneg %p98
      $region34: #{up_forward.3} parent=23 // pred_check_branch
        %218 = sbr.rel (%p216) target = $region36
      $region35: #{up_forward.3} parent=23 // pred_region
        _
      $region36: #{up_forward.3} parent=23 // pred_fallthru
        _
    $region24: #{up_forward.3} parent=5 // pred_fallthru
      _
    %p219 = scmp.le.s32.totalorder 2, %s9
    // Predicated region
    $region37: #{up_forward.3} parent=5 // pred_check
      %p220 = pneg %p219
    $region38: #{up_forward.3} parent=5 // pred_check_branch
      %222 = sbr.rel (%p220) target = $region40
    $region39: #{up_forward.3} parent=5 // pred_region
      %s223 = ssub.s32 %s9, 2
      // Predicated region
      $region41: #{up_forward.3} parent=39 // pred_check
        %p224 = pneg %p78
      $region42: #{up_forward.3} parent=39 // pred_check_branch
        %226 = sbr.rel (%p224) target = $region44
      $region43: #{up_forward.3} parent=39 // pred_region
        %p227 = scmp.lt.s32.totalorder %s20, 1
        %s228 = scalar_select %p227, %s20, 1
        %s229 = scalar_lea.vmem %s1, %s228
      $region44: #{up_forward.3} parent=39 // pred_fallthru
        _
      // Predicated region
      $region45: #{up_forward.3} parent=39 // pred_check
        %p230 = pneg %p104
      $region46: #{up_forward.3} parent=39 // pred_check_branch
        %232 = sbr.rel (%p230) target = $region48
      $region47: #{up_forward.3} parent=39 // pred_region
        %p233 = scmp.lt.s32.totalorder %s20, 1
        %s234 = scalar_select %p233, %s20, 1
        %s235 = scalar_lea.vmem %s2, %s234
      $region48: #{up_forward.3} parent=39 // pred_fallthru
        _
    $region40: #{up_forward.3} parent=5 // pred_fallthru
      _
  $region6: #{up_forward.3} parent=0 // loop_footer
    %s13 = sadd.s32 1, %s9
  $region7: #{up_forward.3} parent=0 // loop_footer_branch
    %8 = sbr.rel target = $region3
  $region8: #{up_forward.3} parent=0 // loop_exit
    _

// kernel: up_forward.4
$region0: #{up_forward.4}
  #allocation0 [shape = 'u32[]', space=smem, size = 0x4, offset = 0x4, fixed_abs, tag = 'smem constant byte address 0x4 - core index']
  #allocation1 [shape = 'u32[144,128]{1,0:T(1,128)}', space=vmem, size = 0x12000, scoped, tag = 'internal scratch']
  #allocation2 [shape = 'f32[1,128]{1,0:T(1,128)}', space=vmem, size = 0x200, scoped, tag = 'scratch operand']
  #allocation3 [shape = 'f32[16,128]{1,0:T(8,128)}', space=vmem, size = 0x2000, scoped, tag = 'scratch operand']
  %s0 = inlined_call_operand.vmem [shape: f32[2,16,128], index: 0, kind: input, shape index: {}]
  %s1 = inlined_call_operand.vmem [shape: f32[1,128], index: 1, kind: input, shape index: {}]
  %s2 = inlined_call_operand.vmem [shape: f32[1,128], index: 2, kind: input, shape index: {}]
  %s3 = inlined_call_operand.vmem [shape: bf16[3,128,128], index: 3, kind: input, shape index: {}]
  %s4 = inlined_call_operand.vmem [shape: f32[2,16,128], index: 4, kind: output, shape index: {0}]
  %s5 = inlined_call_operand.vmem [shape: f32[2,1,128], index: 5, kind: output, shape index: {1}]
  %s6 = inlined_call_operand.vmem [shape: f32[2,1,128], index: 6, kind: output, shape index: {2}]
  %7 = xla_tuple %s4, %s5, %s6
  %s8 = sld [smem:[#allocation0]]
  $region77: #{up_forward.4} parent=0
    _
  %s10 = ssub.s32 1, %s8
  %s11 = scalar_select 0, %s10, %s8
  loop: start=0, step=1, limit=6
  $region2: #{up_forward.4} parent=0 // loop_pre_header
    _
  $region3: #{up_forward.4} parent=0 // loop_header
    %s13 = sphi 0, %s17
    %p14 = scmp.ge.s32.totalorder %s13, 6
    %s20 = sphi 0, %s32
    %s21 = sphi 0, %s28
    %s22 = sphi 0, %s20
    %s23 = sphi 0, %s21
    %s24 = sphi 0, %s22
    %s25 = sphi 0, %s23
    %s41 = sphi 0, %s43
    %s44 = sphi 0, %s41
    %s45 = sphi 0, %s44
    %s61 = sphi 0, %s45
    %s65 = sphi 0, %s65
    %s67 = sphi 0, %s65
    %s68 = sphi 0, %s67
    %s82 = sphi 0, %s68
    %s86 = sphi 0, %s86
    %s88 = sphi 0, %s86
    %s89 = sphi 0, %s88
    %s103 = sphi 0, %s89
    %s107 = sphi 0, %s107
    %s109 = sphi 0, %s107
    %s110 = sphi 0, %s109
    %s124 = sphi 0, %s110
    %s138 = sphi 0, %s140
    %s141 = sphi 0, %s138
    %s142 = sphi 0, %s141
    %s158 = sphi 0, %s142
    %s164 = sphi 0, %s166
    %s167 = sphi 0, %s164
    %s168 = sphi 0, %s167
    %s184 = sphi 0, %s168
    %s190 = sphi 0, %s192
    %s193 = sphi 0, %s190
    %s194 = sphi 0, %s193
    %s210 = sphi 0, %s194
  $region4: #{up_forward.4} parent=0 // loop_header_branch
    %16 = sbr.rel (%p14) target = $region8
  $region5: #{up_forward.4} parent=0 // loop_body
    %s18 = ssub.s32 %s13, 1
    %s19 = ssub.s32 %s13, 2
    %s26 = sadd.s32 1, %s21
    %p27 = scmp.ge.s32.totalorder %s26, 2
    %s28 = scalar_select %p27, 0, %s26
    %s29 = sadd.s32 1, %s20
    %s30 = scalar_select %p27, %s29, %s20
    %p31 = scmp.ge.s32.totalorder %s30, 2
    %s32 = scalar_select %p31, 0, %s30
    %p33 = scmp.lt.s32.totalorder %s21, 0
    %s34 = scalar_select %p33, %s21, 0
    %p35 = scmp.lt.s32.totalorder %s28, 0
    %s36 = scalar_select %p35, %s28, 0
    %s37 = ssub.s32 %s20, %s32
    %s38 = ssub.s32 %s34, %s36
    %s39 = sor.u32 %s37, %s38
    %p40 = scmp.eq.s32.totalorder %s39, 0
    %s42 = sadd.s32 %s41, 1
    %s43 = scalar_select %p40, %s41, %s42
    %p46 = pneg %p40
    %p47 = scmp.eq.s32.totalorder %s13, 3
    %p48 = por %p46, %p47
    %p49 = scmp.ne.s32.totalorder %s41, %s44
    %p50 = scmp.eq.s32.totalorder %s13, 0
    %p51 = por %p49, %p50
    %p52 = scmp.ne.s32.totalorder %s41, %s44
    %p53 = scmp.eq.s32.totalorder %s18, 3
    %p54 = por %p52, %p53
    %p55 = scmp.ne.s32.totalorder %s44, %s45
    %p56 = scmp.eq.s32.totalorder %s18, 0
    %p57 = por %p55, %p56
    %p58 = scmp.ne.s32.totalorder %s44, %s45
    %p59 = scmp.eq.s32.totalorder %s19, 3
    %p60 = por %p58, %p59
    %p62 = scmp.ne.s32.totalorder %s45, %s61
    %p63 = scmp.eq.s32.totalorder %s19, 0
    %p64 = por %p62, %p63
    %s66 = sadd.s32 %s65, 1
    %p69 = scmp.eq.s32.totalorder %s13, 3
    %p70 = scmp.ne.s32.totalorder %s65, %s67
    %p71 = scmp.eq.s32.totalorder %s13, 0
    %p72 = por %p70, %p71
    %p73 = scmp.ne.s32.totalorder %s65, %s67
    %p74 = scmp.eq.s32.totalorder %s18, 3
    %p75 = por %p73, %p74
    %p76 = scmp.ne.s32.totalorder %s67, %s68
    %p77 = scmp.eq.s32.totalorder %s18, 0
    %p78 = por %p76, %p77
    %p79 = scmp.ne.s32.totalorder %s67, %s68
    %p80 = scmp.eq.s32.totalorder %s19, 3
    %p81 = por %p79, %p80
    %p83 = scmp.ne.s32.totalorder %s68, %s82
    %p84 = scmp.eq.s32.totalorder %s19, 0
    %p85 = por %p83, %p84
    %s87 = sadd.s32 %s86, 1
    %p90 = scmp.eq.s32.totalorder %s13, 3
    %p91 = scmp.ne.s32.totalorder %s86, %s88
    %p92 = scmp.eq.s32.totalorder %s13, 0
    %p93 = por %p91, %p92
    %p94 = scmp.ne.s32.totalorder %s86, %s88
    %p95 = scmp.eq.s32.totalorder %s18, 3
    %p96 = por %p94, %p95
    %p97 = scmp.ne.s32.totalorder %s88, %s89
    %p98 = scmp.eq.s32.totalorder %s18, 0
    %p99 = por %p97, %p98
    %p100 = scmp.ne.s32.totalorder %s88, %s89
    %p101 = scmp.eq.s32.totalorder %s19, 3
    %p102 = por %p100, %p101
    %p104 = scmp.ne.s32.totalorder %s89, %s103
    %p105 = scmp.eq.s32.totalorder %s19, 0
    %p106 = por %p104, %p105
    %s108 = sadd.s32 %s107, 1
    %p111 = scmp.eq.s32.totalorder %s13, 3
    %p112 = scmp.ne.s32.totalorder %s107, %s109
    %p113 = scmp.eq.s32.totalorder %s13, 0
    %p114 = por %p112, %p113
    %p115 = scmp.ne.s32.totalorder %s107, %s109
    %p116 = scmp.eq.s32.totalorder %s18, 3
    %p117 = por %p115, %p116
    %p118 = scmp.ne.s32.totalorder %s109, %s110
    %p119 = scmp.eq.s32.totalorder %s18, 0
    %p120 = por %p118, %p119
    %p121 = scmp.ne.s32.totalorder %s109, %s110
    %p122 = scmp.eq.s32.totalorder %s19, 3
    %p123 = por %p121, %p122
    %p125 = scmp.ne.s32.totalorder %s110, %s124
    %p126 = scmp.eq.s32.totalorder %s19, 0
    %p127 = por %p125, %p126
    %s128 = ssub.s32 %s21, 1
    %p129 = scmp.gt.s32.totalorder %s128, 0
    %s130 = scalar_select %p129, %s128, 0
    %s131 = ssub.s32 %s28, 1
    %p132 = scmp.gt.s32.totalorder %s131, 0
    %s133 = scalar_select %p132, %s131, 0
    %s134 = ssub.s32 %s20, %s32
    %s135 = ssub.s32 %s130, %s133
    %s136 = sor.u32 %s134, %s135
    %p137 = scmp.eq.s32.totalorder %s136, 0
    %s139 = sadd.s32 %s138, 1
    %s140 = scalar_select %p137, %s138, %s139
    %p143 = pneg %p137
    %p144 = scmp.eq.s32.totalorder %s13, 3
    %p145 = por %p143, %p144
    %p146 = scmp.ne.s32.totalorder %s138, %s141
    %p147 = scmp.eq.s32.totalorder %s13, 0
    %p148 = por %p146, %p147
    %p149 = scmp.ne.s32.totalorder %s138, %s141
    %p150 = scmp.eq.s32.totalorder %s18, 3
    %p151 = por %p149, %p150
    %p152 = scmp.ne.s32.totalorder %s141, %s142
    %p153 = scmp.eq.s32.totalorder %s18, 0
    %p154 = por %p152, %p153
    %p155 = scmp.ne.s32.totalorder %s141, %s142
    %p156 = scmp.eq.s32.totalorder %s19, 3
    %p157 = por %p155, %p156
    %p159 = scmp.ne.s32.totalorder %s142, %s158
    %p160 = scmp.eq.s32.totalorder %s19, 0
    %p161 = por %p159, %p160
    %s162 = ssub.s32 %s20, %s32
    %p163 = scmp.eq.s32.totalorder %s162, 0
    %s165 = sadd.s32 %s164, 1
    %s166 = scalar_select %p163, %s164, %s165
    %p169 = pneg %p163
    %p170 = scmp.eq.s32.totalorder %s13, 3
    %p171 = por %p169, %p170
    %p172 = scmp.ne.s32.totalorder %s164, %s167
    %p173 = scmp.eq.s32.totalorder %s13, 0
    %p174 = por %p172, %p173
    %p175 = scmp.ne.s32.totalorder %s164, %s167
    %p176 = scmp.eq.s32.totalorder %s18, 3
    %p177 = por %p175, %p176
    %p178 = scmp.ne.s32.totalorder %s167, %s168
    %p179 = scmp.eq.s32.totalorder %s18, 0
    %p180 = por %p178, %p179
    %p181 = scmp.ne.s32.totalorder %s167, %s168
    %p182 = scmp.eq.s32.totalorder %s19, 3
    %p183 = por %p181, %p182
    %p185 = scmp.ne.s32.totalorder %s168, %s184
    %p186 = scmp.eq.s32.totalorder %s19, 0
    %p187 = por %p185, %p186
    %s188 = ssub.s32 %s20, %s32
    %p189 = scmp.eq.s32.totalorder %s188, 0
    %s191 = sadd.s32 %s190, 1
    %s192 = scalar_select %p189, %s190, %s191
    %p195 = pneg %p189
    %p196 = scmp.eq.s32.totalorder %s13, 3
    %p197 = por %p195, %p196
    %p198 = scmp.ne.s32.totalorder %s190, %s193
    %p199 = scmp.eq.s32.totalorder %s13, 0
    %p200 = por %p198, %p199
    %p201 = scmp.ne.s32.totalorder %s190, %s193
    %p202 = scmp.eq.s32.totalorder %s18, 3
    %p203 = por %p201, %p202
    %p204 = scmp.ne.s32.totalorder %s193, %s194
    %p205 = scmp.eq.s32.totalorder %s18, 0
    %p206 = por %p204, %p205
    %p207 = scmp.ne.s32.totalorder %s193, %s194
    %p208 = scmp.eq.s32.totalorder %s19, 3
    %p209 = por %p207, %p208
    %p211 = scmp.ne.s32.totalorder %s194, %s210
    %p212 = scmp.eq.s32.totalorder %s19, 0
    %p213 = por %p211, %p212
    %p214 = scmp.le.s32.totalorder 1, %s13
    %p215 = scmp.lt.s32.totalorder %s13, 5
    %p216 = pnand %p214, %p215
    %p217 = pneg %p216
    // Predicated region
    $region9: #{up_forward.4} parent=5 // pred_check
      _
    $region10: #{up_forward.4} parent=5 // pred_check_branch
      %219 = sbr.rel (%p216) target = $region12
    $region11: #{up_forward.4} parent=5 // pred_region
      %s220 = ssub.s32 %s13, 1
      // Predicated region
      $region13: #{up_forward.4} parent=11 // pred_check
        %p221 = pneg %p78
      $region14: #{up_forward.4} parent=11 // pred_check_branch
        %223 = sbr.rel (%p221) target = $region16
      $region15: #{up_forward.4} parent=11 // pred_region
        _
      $region16: #{up_forward.4} parent=11 // pred_fallthru
        _
      // Predicated region
      $region17: #{up_forward.4} parent=11 // pred_check
        %p224 = pneg %p99
      $region18: #{up_forward.4} parent=11 // pred_check_branch
        %226 = sbr.rel (%p224) target = $region20
      $region19: #{up_forward.4} parent=11 // pred_region
        _
      $region20: #{up_forward.4} parent=11 // pred_fallthru
        _
      // Predicated region
      $region21: #{up_forward.4} parent=11 // pred_check
        %p227 = pneg %p120
      $region22: #{up_forward.4} parent=11 // pred_check_branch
        %229 = sbr.rel (%p227) target = $region24
      $region23: #{up_forward.4} parent=11 // pred_region
        _
      $region24: #{up_forward.4} parent=11 // pred_fallthru
        _
    $region12: #{up_forward.4} parent=5 // pred_fallthru
      _
    %p230 = scmp.lt.s32.totalorder %s13, 4
    // Predicated region
    $region25: #{up_forward.4} parent=5 // pred_check
      %p231 = pneg %p230
    $region26: #{up_forward.4} parent=5 // pred_check_branch
      %233 = sbr.rel (%p231) target = $region28
    $region27: #{up_forward.4} parent=5 // pred_region
      // Predicated region
      $region29: #{up_forward.4} parent=27 // pred_check
        %p234 = pneg %p51
      $region30: #{up_forward.4} parent=27 // pred_check_branch
        %236 = sbr.rel (%p234) target = $region32
      $region31: #{up_forward.4} parent=27 // pred_region
        %p237 = scmp.lt.s32.totalorder %s21, 0
        %s238 = scalar_select %p237, %s21, 0
        %s239 = smul.u32 2, %s238
        %p240 = scmp.lt.s32.totalorder %s20, 1
        %s241 = scalar_select %p240, %s20, 1
        %p242 = scmp.lt.s32.totalorder %s239, 1
        %s243 = scalar_select %p242, %s239, 1
        %s244 = smul.addr %s241, 2
        %s245 = sadd.s32 %s243, %s244
        %s246 = smul.addr %s245, 8
        %s247 = scalar_lea.vmem %s0, %s246
        %p248 = scmp.lt.s32.totalorder %s21, 0
        %s249 = scalar_select %p248, %s21, 0
        %s250 = smul.u32 2, %s249
      $region32: #{up_forward.4} parent=27 // pred_fallthru
        _
    $region28: #{up_forward.4} parent=5 // pred_fallthru
      _
    %p251 = scmp.le.s32.totalorder 1, %s13
    %p252 = scmp.lt.s32.totalorder %s13, 5
    %p253 = pnand %p251, %p252
    %p254 = pneg %p253
    // Predicated region
    $region33: #{up_forward.4} parent=5 // pred_check
      _
    $region34: #{up_forward.4} parent=5 // pred_check_branch
      %256 = sbr.rel (%p253) target = $region36
    $region35: #{up_forward.4} parent=5 // pred_region
      %s257 = ssub.s32 %s13, 1
      %p258 = scmp.lt.s32.totalorder %s23, 0
      %s259 = scalar_select %p258, %s23, 0
      %s260 = smul.u32 2, %s259
      %p261 = scmp.lt.s32.totalorder %s22, 1
      %s262 = scalar_select %p261, %s22, 1
      %p263 = scmp.lt.s32.totalorder %s260, 1
      %s264 = scalar_select %p263, %s260, 1
      %s265 = smul.addr %s262, 2
      %s266 = sadd.s32 %s264, %s265
      %s267 = smul.addr %s266, 8
      %s268 = scalar_lea.vmem %s0, %s267
      %p269 = pneg %p57
      %p270 = pneg %p54
      %p271 = pneg %p78
      %p272 = pneg %p75
      %p273 = pneg %p99
      %p274 = pneg %p96
      %p275 = pneg %p120
      %p276 = pneg %p117
      %p277 = pneg %p154
      %p278 = pneg %p151
      %s279 = ssub.s32 %s23, 1
      %p280 = scmp.gt.s32.totalorder %s279, 0
      %s281 = scalar_select %p280, %s279, 0
      %s282 = smul.u32 2, %s281
      %p283 = scmp.lt.s32.totalorder %s22, 1
      %s284 = scalar_select %p283, %s22, 1
      %p285 = scmp.lt.s32.totalorder %s282, 1
      %s286 = scalar_select %p285, %s282, 1
      %s287 = smul.addr %s284, 2
      %s288 = sadd.s32 %s286, %s287
      %s289 = smul.addr %s288, 8
      %s290 = scalar_lea.vmem %s4, %s289
      %p291 = pneg %p180
      %p292 = pneg %p177
      %p293 = scmp.lt.s32.totalorder %s22, 1
      %s294 = scalar_select %p293, %s22, 1
      %s295 = scalar_lea.vmem %s5, %s294
      %p296 = pneg %p206
      %p297 = pneg %p203
      %p298 = scmp.lt.s32.totalorder %s22, 1
      %s299 = scalar_select %p298, %s22, 1
      %s300 = scalar_lea.vmem %s6, %s299
      %p301 = scmp.lt.s32.totalorder %s23, 0
      %s302 = scalar_select %p301, %s23, 0
      %s303 = smul.u32 2, %s302
      %p304 = scmp.lt.s32.totalorder %s22, 1
      %s305 = scalar_select %p304, %s22, 1
      %p306 = scmp.lt.s32.totalorder %s303, 1
      %s307 = scalar_select %p306, %s303, 1
      %s308 = smul.addr %s305, 2
      %s309 = sadd.s32 %s307, %s308
      %s310 = smul.addr %s309, 8
      %s311 = scalar_lea.vmem %s0, %s310
      %p312 = scmp.lt.s32.totalorder %s23, 0
      %s313 = scalar_select %p312, %s23, 0
      %s314 = smul.u32 2, %s313
      %s315 = ssub.s32 %s23, 1
      %p316 = scmp.gt.s32.totalorder %s315, 0
      %s317 = scalar_select %p316, %s315, 0
      %s318 = smul.u32 2, %s317
      %p319 = scmp.lt.s32.totalorder %s22, 1
      %s320 = scalar_select %p319, %s22, 1
      %p321 = scmp.lt.s32.totalorder %s318, 1
      %s322 = scalar_select %p321, %s318, 1
      %s323 = smul.addr %s320, 2
      %s324 = sadd.s32 %s322, %s323
      %s325 = smul.addr %s324, 8
      %s326 = scalar_lea.vmem %s4, %s325
      %s327 = ssub.s32 %s23, 1
      %p328 = scmp.gt.s32.totalorder %s327, 0
      %s329 = scalar_select %p328, %s327, 0
      %s330 = smul.u32 2, %s329
      %p331 = scmp.lt.s32.totalorder %s22, 1
      %s332 = scalar_select %p331, %s22, 1
      %s333 = scalar_lea.vmem %s5, %s332
      %p334 = scmp.lt.s32.totalorder %s22, 1
      %s335 = scalar_select %p334, %s22, 1
      %s336 = scalar_lea.vmem %s6, %s335
      %p338 = scmp.eq.s32.totalorder %s23, 0
      // Predicated region
      $region37: #{up_forward.4} parent=35 // pred_check
        %p339 = pneg %p338
      $region38: #{up_forward.4} parent=35 // pred_check_branch
        %341 = sbr.rel (%p339) target = $region40
      $region39: #{up_forward.4} parent=35 // pred_region
        %342 = vst [vmem:[%s333] sm:$0x1] 0.0
        %343 = vst [vmem:[%s336] sm:$0x1] 0.0
      $region40: #{up_forward.4} parent=35 // pred_fallthru
        _
      %p344 = scmp.gt.s32.totalorder %s23, 0
      // Predicated region
      $region41: #{up_forward.4} parent=35 // pred_check
        %p345 = pneg %p344
      $region42: #{up_forward.4} parent=35 // pred_check_branch
        %347 = sbr.rel (%p345) target = $region44
      $region43: #{up_forward.4} parent=35 // pred_region
        %v348 = vld [vmem:[%s1] sm:$0x1]
        %v349 = vld [vmem:[%s2] sm:$0x1]
        %v350 = vld [vmem:[%s311] sm:$0x1]
        %v351 = vld [vmem:[#allocation2] sm:$0x1]
        %v352 = vld [vmem:[#allocation3] sm:$0xff]
        %v353 = vld [vmem:[#allocation3 + $0x8] sm:$0xff]
        %vm356 = vcmask 1040384
        %v357 = vrot.slane %v352, 7
        %v358 = vrot.slane %v353, 7
        %v359 = vsel %vm356, %v357, %v358
        %v364 = vrot.slane %v350, 7
        %v366 = vsel %vm356, %v351, %v357
        %v367 = vsel %vm356, %v358, %v364
        %v369 = vlaneseq
        %v370 = vshrl.u32 %v369, 7
        %v371 = vsub.s32 0, %v370
        %v372 = vrot.slane %v348, %v371
        %v374 = vmul.f32 %v366, %v372
        %v375 = vmul.f32 %v359, %v372
        %v376 = vmul.f32 %v367, %v372
        %v378 = vlaneseq
        %v379 = vshrl.u32 %v378, 7
        %v380 = vsub.s32 0, %v379
        %v381 = vrot.slane %v349, %v380
        %v383 = vadd.f32 %v374, %v381
        %v384 = vadd.f32 %v375, %v381
        %v385 = vadd.f32 %v376, %v381
        %v386 = vlaneseq
        %v387 = vshrl.u32 %v386, 7
        %v388 = vadd.s32 %v387, 8
        %v389 = vadd.s32 %v387, 16
        %vm390 = vcmp.eq.s32.totalorder %v387, 0
        %vm391 = vcmp.eq.s32.totalorder %v388, 0
        %vm392 = vcmp.eq.s32.totalorder %v389, 0
        %p393 = scmp.eq.s32.totalorder %s23, 1
        %s394 = scalar_select %p393, 1, 0
        %v395 = vstv %s394
        %vm396 = vcmp.eq.s32.totalorder %v395, 1
        %vm397 = vmand %vm390, %vm396
        %vm398 = vmand %vm391, %vm396
        %vm399 = vmand %vm392, %vm396
        %vm400 = vcmp.eq.s32.totalorder %v387, 17
        %vm401 = vcmp.eq.s32.totalorder %v388, 17
        %vm402 = vcmp.eq.s32.totalorder %v389, 17
        %vm403 = vmand %vm400, %vm396
        %vm404 = vmand %vm401, %vm396
        %vm405 = vmand %vm402, %vm396
        %vm406 = vmor %vm397, %vm403
        %vm407 = vmor %vm398, %vm404
        %vm408 = vmor %vm399, %vm405
        %v409 = vsel %vm406, 1, 0
        %v410 = vsel %vm407, 1, 0
        %v411 = vsel %vm408, 1, 0
        %vm412 = vcmp.eq.s32.totalorder %v409, 1
        %vm413 = vcmp.eq.s32.totalorder %v410, 1
        %vm414 = vcmp.eq.s32.totalorder %v411, 1
        %v415 = vsel %vm412, 0.0, %v383
        %v416 = vsel %vm413, 0.0, %v384
        %v417 = vsel %vm414, 0.0, %v385
        %v418 = vpack.c.bf16 %v416, %v415
        %v419 = vld [vmem:[%s3] sm:$0xf]
        %v420 = vld [vmem:[%s3 + $0x4] sm:$0xf]
        %v421 = vld [vmem:[%s3 + $0x8] sm:$0xf]
        %v422 = vld [vmem:[%s3 + $0xc] sm:$0xf]
        %v423 = vld [vmem:[%s3 + $0x10] sm:$0xf]
        %v424 = vld [vmem:[%s3 + $0x14] sm:$0xf]
        %v425 = vld [vmem:[%s3 + $0x18] sm:$0xf]
        %v426 = vld [vmem:[%s3 + $0x1c] sm:$0xf]
        %v427 = vld [vmem:[%s3 + $0x20] sm:$0xf]
        %v428 = vld [vmem:[%s3 + $0x24] sm:$0xf]
        %v429 = vld [vmem:[%s3 + $0x28] sm:$0xf]
        %v430 = vld [vmem:[%s3 + $0x2c] sm:$0xf]
        %v431 = vld [vmem:[%s3 + $0x30] sm:$0xf]
        %v432 = vld [vmem:[%s3 + $0x34] sm:$0xf]
        %v433 = vld [vmem:[%s3 + $0x38] sm:$0xf]
        %v434 = vld [vmem:[%s3 + $0x3c] sm:$0xf]
        %v435 = vpack.c.bf16 %v417, %v417
        %s436 = scalar_lea.vmem %s3, 64
        %v437 = vld [vmem:[%s436] sm:$0xf]
        %v438 = vld [vmem:[%s436 + $0x4] sm:$0xf]
        %v439 = vld [vmem:[%s436 + $0x8] sm:$0xf]
        %v440 = vld [vmem:[%s436 + $0xc] sm:$0xf]
        %v441 = vld [vmem:[%s436 + $0x10] sm:$0xf]
        %v442 = vld [vmem:[%s436 + $0x14] sm:$0xf]
        %v443 = vld [vmem:[%s436 + $0x18] sm:$0xf]
        %v444 = vld [vmem:[%s436 + $0x1c] sm:$0xf]
        %v445 = vld [vmem:[%s436 + $0x20] sm:$0xf]
        %v446 = vld [vmem:[%s436 + $0x24] sm:$0xf]
        %v447 = vld [vmem:[%s436 + $0x28] sm:$0xf]
        %v448 = vld [vmem:[%s436 + $0x2c] sm:$0xf]
        %v449 = vld [vmem:[%s436 + $0x30] sm:$0xf]
        %v450 = vld [vmem:[%s436 + $0x34] sm:$0xf]
        %v451 = vld [vmem:[%s436 + $0x38] sm:$0xf]
        %v452 = vld [vmem:[%s436 + $0x3c] sm:$0xf]
        %vm453 = vsmask.f32 7424
        %v455 = vshrl.u32 %v418, 16
        %v457 = vshll.u32 %v418, 16
        %v459 = vrot.slane %v457, 1
        %v460 = vor.u32 %v455, %v459
        %v462 = vshll.u32 %v435, 16
        %v464 = vrot.slane %v462, 1
        %v465 = vsel %vm453, %v460, %v464
        %v483 = vunpack.c.l.b16 %v437
        %v484 = vunpack.c.l.b16 %v438
        %v485 = vunpack.c.l.b16 %v439
        %v486 = vunpack.c.l.b16 %v440
        %v487 = vunpack.c.l.b16 %v441
        %v488 = vunpack.c.l.b16 %v442
        %v489 = vunpack.c.l.b16 %v443
        %v490 = vunpack.c.l.b16 %v444
        %v491 = vunpack.c.l.b16 %v445
        %v492 = vunpack.c.l.b16 %v446
        %v493 = vunpack.c.l.b16 %v447
        %v494 = vunpack.c.l.b16 %v448
        %v495 = vunpack.c.l.b16 %v449
        %v496 = vunpack.c.l.b16 %v450
        %v497 = vunpack.c.l.b16 %v451
        %v498 = vunpack.c.l.b16 %v452
        %v499 = vpack.c.b16 %v484, %v483
        %v500 = vpack.c.b16 %v486, %v485
        %v501 = vpack.c.b16 %v488, %v487
        %v502 = vpack.c.b16 %v490, %v489
        %v503 = vpack.c.b16 %v492, %v491
        %v504 = vpack.c.b16 %v494, %v493
        %v505 = vpack.c.b16 %v496, %v495
        %v506 = vpack.c.b16 %v498, %v497
        %515 = vmatprep.subr.bf16.mxu0 0
        %516 = vmatpush1.bf16.msra.mxu0 %v499
        %517 = vmatprep.subr.bf16.mxu0 0
        %518 = vmatpush1.bf16.msra.mxu0 %v500
        %519 = vmatprep.subr.bf16.mxu0 0
        %520 = vmatpush1.bf16.msra.mxu0 %v501
        %521 = vmatprep.subr.bf16.mxu0 0
        %522 = vmatpush1.bf16.msra.mxu0 %v502
        %523 = vmatprep.subr.bf16.mxu0 0
        %524 = vmatpush1.bf16.msra.mxu0 %v503
        %525 = vmatprep.subr.bf16.mxu0 0
        %526 = vmatpush1.bf16.msra.mxu0 %v504
        %527 = vmatprep.subr.bf16.mxu0 0
        %528 = vmatpush1.bf16.msra.mxu0 %v505
        %529 = vmatprep.subr.bf16.mxu0 0
        %530 = vmatpush1.bf16.msra.mxu0 %v506
        %531 = vmatprep.subr.bf16.mxu0 0
        %532 = vmatpush1.bf16.msra.mxu0 0
        %533 = vmatprep.subr.bf16.mxu0 0
        %534 = vmatpush1.bf16.msra.mxu0 0
        %535 = vmatprep.subr.bf16.mxu0 0
        %536 = vmatpush1.bf16.msra.mxu0 0
        %537 = vmatprep.subr.bf16.mxu0 0
        %538 = vmatpush1.bf16.msra.mxu0 0
        %539 = vmatprep.subr.bf16.mxu0 0
        %540 = vmatpush1.bf16.msra.mxu0 0
        %541 = vmatprep.subr.bf16.mxu0 0
        %542 = vmatpush1.bf16.msra.mxu0 0
        %543 = vmatprep.subr.bf16.mxu0 0
        %544 = vmatpush1.bf16.msra.mxu0 0
        %545 = vmatprep.subr.bf16.mxu0 0
        %546 = vmatpush1.bf16.msra.mxu0 0
        %547 = vmatprep.mubr.bf16.mxu0 0
        %548 = vmatmul.mubr.bf16.gmra.mrb[0].mxu0 %v465
        %v549 = vpop.f32.mrb[0].mxu0
        %v550 = vadd.f32 0.0, %v549
        %v551 = vpop.f32.mrb[0].mxu0
        %v552 = vpop.f32.mrb[0].mxu0
        %v553 = vadd.f32 0.0, %v552
        %v554 = vpop.f32.mrb[0].mxu0
        %555 = vdwg.mxu0
        %v572 = vunpack.c.l.b16 %v419
        %v573 = vunpack.c.l.b16 %v420
        %v574 = vunpack.c.l.b16 %v421
        %v575 = vunpack.c.l.b16 %v422
        %v576 = vunpack.c.l.b16 %v423
        %v577 = vunpack.c.l.b16 %v424
        %v578 = vunpack.c.l.b16 %v425
        %v579 = vunpack.c.l.b16 %v426
        %v580 = vunpack.c.l.b16 %v427
        %v581 = vunpack.c.l.b16 %v428
        %v582 = vunpack.c.l.b16 %v429
        %v583 = vunpack.c.l.b16 %v430
        %v584 = vunpack.c.l.b16 %v431
        %v585 = vunpack.c.l.b16 %v432
        %v586 = vunpack.c.l.b16 %v433
        %v587 = vunpack.c.l.b16 %v434
        %v588 = vpack.c.b16 %v573, %v572
        %v589 = vpack.c.b16 %v575, %v574
        %v590 = vpack.c.b16 %v577, %v576
        %v591 = vpack.c.b16 %v579, %v578
        %v592 = vpack.c.b16 %v581, %v580
        %v593 = vpack.c.b16 %v583, %v582
        %v594 = vpack.c.b16 %v585, %v584
        %v595 = vpack.c.b16 %v587, %v586
        %604 = vmatprep.subr.bf16.mxu0 0
        %605 = vmatpush1.bf16.msra.mxu0 %v588
        %606 = vmatprep.subr.bf16.mxu0 0
        %607 = vmatpush1.bf16.msra.mxu0 %v589
        %608 = vmatprep.subr.bf16.mxu0 0
        %609 = vmatpush1.bf16.msra.mxu0 %v590
        %610 = vmatprep.subr.bf16.mxu0 0
        %611 = vmatpush1.bf16.msra.mxu0 %v591
        %612 = vmatprep.subr.bf16.mxu0 0
        %613 = vmatpush1.bf16.msra.mxu0 %v592
        %614 = vmatprep.subr.bf16.mxu0 0
        %615 = vmatpush1.bf16.msra.mxu0 %v593
        %616 = vmatprep.subr.bf16.mxu0 0
        %617 = vmatpush1.bf16.msra.mxu0 %v594
        %618 = vmatprep.subr.bf16.mxu0 0
        %619 = vmatpush1.bf16.msra.mxu0 %v595
        %620 = vmatprep.subr.bf16.mxu0 0
        %621 = vmatpush1.bf16.msra.mxu0 0
        %622 = vmatprep.subr.bf16.mxu0 0
        %623 = vmatpush1.bf16.msra.mxu0 0
        %624 = vmatprep.subr.bf16.mxu0 0
        %625 = vmatpush1.bf16.msra.mxu0 0
        %626 = vmatprep.subr.bf16.mxu0 0
        %627 = vmatpush1.bf16.msra.mxu0 0
        %628 = vmatprep.subr.bf16.mxu0 0
        %629 = vmatpush1.bf16.msra.mxu0 0
        %630 = vmatprep.subr.bf16.mxu0 0
        %631 = vmatpush1.bf16.msra.mxu0 0
        %632 = vmatprep.subr.bf16.mxu0 0
        %633 = vmatpush1.bf16.msra.mxu0 0
        %634 = vmatprep.subr.bf16.mxu0 0
        %635 = vmatpush1.bf16.msra.mxu0 0
        %636 = vmatprep.mubr.bf16.mxu0 0
        %637 = vmatmul.mubr.bf16.gmra.mrb[0].mxu0 %v418
        %v638 = vpop.f32.mrb[0].mxu0
        %v639 = vadd.f32 %v550, %v638
        %v640 = vpop.f32.mrb[0].mxu0
        %v641 = vpop.f32.mrb[0].mxu0
        %v642 = vadd.f32 %v553, %v641
        %v643 = vpop.f32.mrb[0].mxu0
        %644 = vdwg.mxu0
        %s645 = scalar_lea.vmem %s3, 128
        %v646 = vld [vmem:[%s645] sm:$0xf]
        %v647 = vld [vmem:[%s645 + $0x4] sm:$0xf]
        %v648 = vld [vmem:[%s645 + $0x8] sm:$0xf]
        %v649 = vld [vmem:[%s645 + $0xc] sm:$0xf]
        %v650 = vld [vmem:[%s645 + $0x10] sm:$0xf]
        %v651 = vld [vmem:[%s645 + $0x14] sm:$0xf]
        %v652 = vld [vmem:[%s645 + $0x18] sm:$0xf]
        %v653 = vld [vmem:[%s645 + $0x1c] sm:$0xf]
        %v654 = vld [vmem:[%s645 + $0x20] sm:$0xf]
        %v655 = vld [vmem:[%s645 + $0x24] sm:$0xf]
        %v656 = vld [vmem:[%s645 + $0x28] sm:$0xf]
        %v657 = vld [vmem:[%s645 + $0x2c] sm:$0xf]
        %v658 = vld [vmem:[%s645 + $0x30] sm:$0xf]
        %v659 = vld [vmem:[%s645 + $0x34] sm:$0xf]
        %v660 = vld [vmem:[%s645 + $0x38] sm:$0xf]
        %v661 = vld [vmem:[%s645 + $0x3c] sm:$0xf]
        %vm664 = vcmask 1046528
        %v665 = vrot.slane %v418, 1
        %v666 = vrot.slane %v435, 1
        %v667 = vsel %vm664, %v665, %v666
        %v685 = vunpack.c.l.b16 %v646
        %v686 = vunpack.c.l.b16 %v647
        %v687 = vunpack.c.l.b16 %v648
        %v688 = vunpack.c.l.b16 %v649
        %v689 = vunpack.c.l.b16 %v650
        %v690 = vunpack.c.l.b16 %v651
        %v691 = vunpack.c.l.b16 %v652
        %v692 = vunpack.c.l.b16 %v653
        %v693 = vunpack.c.l.b16 %v654
        %v694 = vunpack.c.l.b16 %v655
        %v695 = vunpack.c.l.b16 %v656
        %v696 = vunpack.c.l.b16 %v657
        %v697 = vunpack.c.l.b16 %v658
        %v698 = vunpack.c.l.b16 %v659
        %v699 = vunpack.c.l.b16 %v660
        %v700 = vunpack.c.l.b16 %v661
        %v701 = vpack.c.b16 %v686, %v685
        %v702 = vpack.c.b16 %v688, %v687
        %v703 = vpack.c.b16 %v690, %v689
        %v704 = vpack.c.b16 %v692, %v691
        %v705 = vpack.c.b16 %v694, %v693
        %v706 = vpack.c.b16 %v696, %v695
        %v707 = vpack.c.b16 %v698, %v697
        %v708 = vpack.c.b16 %v700, %v699
        %717 = vmatprep.subr.bf16.mxu0 0
        %718 = vmatpush1.bf16.msra.mxu0 %v701
        %719 = vmatprep.subr.bf16.mxu0 0
        %720 = vmatpush1.bf16.msra.mxu0 %v702
        %721 = vmatprep.subr.bf16.mxu0 0
        %722 = vmatpush1.bf16.msra.mxu0 %v703
        %723 = vmatprep.subr.bf16.mxu0 0
        %724 = vmatpush1.bf16.msra.mxu0 %v704
        %725 = vmatprep.subr.bf16.mxu0 0
        %726 = vmatpush1.bf16.msra.mxu0 %v705
        %727 = vmatprep.subr.bf16.mxu0 0
        %728 = vmatpush1.bf16.msra.mxu0 %v706
        %729 = vmatprep.subr.bf16.mxu0 0
        %730 = vmatpush1.bf16.msra.mxu0 %v707
        %731 = vmatprep.subr.bf16.mxu0 0
        %732 = vmatpush1.bf16.msra.mxu0 %v708
        %733 = vmatprep.subr.bf16.mxu0 0
        %734 = vmatpush1.bf16.msra.mxu0 0
        %735 = vmatprep.subr.bf16.mxu0 0
        %736 = vmatpush1.bf16.msra.mxu0 0
        %737 = vmatprep.subr.bf16.mxu0 0
        %738 = vmatpush1.bf16.msra.mxu0 0
        %739 = vmatprep.subr.bf16.mxu0 0
        %740 = vmatpush1.bf16.msra.mxu0 0
        %741 = vmatprep.subr.bf16.mxu0 0
        %742 = vmatpush1.bf16.msra.mxu0 0
        %743 = vmatprep.subr.bf16.mxu0 0
        %744 = vmatpush1.bf16.msra.mxu0 0
        %745 = vmatprep.subr.bf16.mxu0 0
        %746 = vmatpush1.bf16.msra.mxu0 0
        %747 = vmatprep.subr.bf16.mxu0 0
        %748 = vmatpush1.bf16.msra.mxu0 0
        %749 = vmatprep.mubr.bf16.mxu0 0
        %750 = vmatmul.mubr.bf16.gmra.mrb[0].mxu0 %v667
        %v751 = vpop.f32.mrb[0].mxu0
        %v752 = vadd.f32 0.0, %v751
        %v753 = vpop.f32.mrb[0].mxu0
        %v754 = vpop.f32.mrb[0].mxu0
        %v755 = vadd.f32 0.0, %v754
        %v756 = vpop.f32.mrb[0].mxu0
        %757 = vdwg.mxu0
        %v758 = vadd.f32 %v639, %v752
        %v759 = vadd.f32 %v642, %v755
        %760 = vst [vmem:[%s326] sm:$0xff] %v758
        %761 = vst [vmem:[%s326 + $0x8] sm:$0xff] %v759
        %v762 = vld [vmem:[%s333] sm:$0x1]
        %v763 = vadd.f32 %v758, %v759
        %v764 = vrot.slane %v763, 4
        %v765 = vadd.f32 %v763, %v764
        %v766 = vrot.slane %v765, 2
        %v767 = vadd.f32 %v765, %v766
        %v768 = vrot.slane %v767, 1
        %v769 = vadd.f32 %v767, %v768
        %v770 = vadd.f32 %v762, %v769
        %771 = vst [vmem:[%s333] sm:$0x1] %v770
        %v772 = vld [vmem:[%s336] sm:$0x1]
        %v773 = vmul.f32 %v758, %v758
        %v774 = vmul.f32 %v759, %v759
        %v775 = vadd.f32 %v773, %v774
        %v776 = vrot.slane %v775, 4
        %v777 = vadd.f32 %v775, %v776
        %v778 = vrot.slane %v777, 2
        %v779 = vadd.f32 %v777, %v778
        %v780 = vrot.slane %v779, 1
        %v781 = vadd.f32 %v779, %v780
        %v782 = vadd.f32 %v772, %v781
        %783 = vst [vmem:[%s336] sm:$0x1] %v782
      $region44: #{up_forward.4} parent=35 // pred_fallthru
        _
      %p784 = scmp.lt.s32.totalorder %s23, 1
      // Predicated region
      $region45: #{up_forward.4} parent=35 // pred_check
        %p785 = pneg %p784
      $region46: #{up_forward.4} parent=35 // pred_check_branch
        %787 = sbr.rel (%p785) target = $region48
      $region47: #{up_forward.4} parent=35 // pred_region
        %v788 = vld [vmem:[#allocation3 + $0xf] sm:$0x1]
        %s789 = scalar_select %p338, 1, 0
        %v790 = vstv %s789
        %vm791 = vcmp.eq.s32.totalorder %v790, 1
        %v792 = vsel %vm791, 0.0, %v788
        %793 = vst [vmem:[#allocation2] sm:$0x1] %v792
        %v794 = vld [vmem:[%s311] sm:$0xff]
        %v795 = vld [vmem:[%s311 + $0x8] sm:$0xff]
        %796 = vst [vmem:[#allocation3] sm:$0xff] %v794
        %797 = vst [vmem:[#allocation3 + $0x8] sm:$0xff] %v795
      $region48: #{up_forward.4} parent=35 // pred_fallthru
        _
      %s798 = ssub.s32 %s23, 1
      %p799 = scmp.gt.s32.totalorder %s798, 0
      %s800 = scalar_select %p799, %s798, 0
      %s801 = smul.u32 2, %s800
      %p802 = scmp.lt.s32.totalorder %s22, 1
      %s803 = scalar_select %p802, %s22, 1
      %p804 = scmp.lt.s32.totalorder %s801, 1
      %s805 = scalar_select %p804, %s801, 1
      %s806 = smul.addr %s803, 2
      %s807 = sadd.s32 %s805, %s806
      %s808 = smul.addr %s807, 8
      %s809 = scalar_lea.vmem %s4, %s808
      %p810 = scmp.lt.s32.totalorder %s22, 1
      %s811 = scalar_select %p810, %s22, 1
      %s812 = scalar_lea.vmem %s5, %s811
      %p813 = scmp.lt.s32.totalorder %s22, 1
      %s814 = scalar_select %p813, %s22, 1
      %s815 = scalar_lea.vmem %s6, %s814
      // Predicated region
      $region49: #{up_forward.4} parent=35 // pred_check
        %p816 = pneg %p151
      $region50: #{up_forward.4} parent=35 // pred_check_branch
        %818 = sbr.rel (%p816) target = $region52
      $region51: #{up_forward.4} parent=35 // pred_region
        %s819 = ssub.s32 %s23, 1
        %p820 = scmp.gt.s32.totalorder %s819, 0
        %s821 = scalar_select %p820, %s819, 0
        %s822 = smul.u32 2, %s821
      $region52: #{up_forward.4} parent=35 // pred_fallthru
        _
      // Predicated region
      $region53: #{up_forward.4} parent=35 // pred_check
        %p823 = pneg %p177
      $region54: #{up_forward.4} parent=35 // pred_check_branch
        %825 = sbr.rel (%p823) target = $region56
      $region55: #{up_forward.4} parent=35 // pred_region
        _
      $region56: #{up_forward.4} parent=35 // pred_fallthru
        _
      // Predicated region
      $region57: #{up_forward.4} parent=35 // pred_check
        %p826 = pneg %p203
      $region58: #{up_forward.4} parent=35 // pred_check_branch
        %828 = sbr.rel (%p826) target = $region60
      $region59: #{up_forward.4} parent=35 // pred_region
        _
      $region60: #{up_forward.4} parent=35 // pred_fallthru
        _
    $region36: #{up_forward.4} parent=5 // pred_fallthru
      _
    %p829 = scmp.le.s32.totalorder 2, %s13
    // Predicated region
    $region61: #{up_forward.4} parent=5 // pred_check
      %p830 = pneg %p829
    $region62: #{up_forward.4} parent=5 // pred_check_branch
      %832 = sbr.rel (%p830) target = $region64
    $region63: #{up_forward.4} parent=5 // pred_region
      %s833 = ssub.s32 %s13, 2
      // Predicated region
      $region65: #{up_forward.4} parent=63 // pred_check
        %p834 = pneg %p157
      $region66: #{up_forward.4} parent=63 // pred_check_branch
        %836 = sbr.rel (%p834) target = $region68
      $region67: #{up_forward.4} parent=63 // pred_region
        %s837 = ssub.s32 %s25, 1
        %p838 = scmp.gt.s32.totalorder %s837, 0
        %s839 = scalar_select %p838, %s837, 0
        %s840 = smul.u32 2, %s839
        %p841 = scmp.lt.s32.totalorder %s24, 1
        %s842 = scalar_select %p841, %s24, 1
        %p843 = scmp.lt.s32.totalorder %s840, 1
        %s844 = scalar_select %p843, %s840, 1
        %s845 = smul.addr %s842, 2
        %s846 = sadd.s32 %s844, %s845
        %s847 = smul.addr %s846, 8
        %s848 = scalar_lea.vmem %s4, %s847
      $region68: #{up_forward.4} parent=63 // pred_fallthru
        _
      // Predicated region
      $region69: #{up_forward.4} parent=63 // pred_check
        %p849 = pneg %p183
      $region70: #{up_forward.4} parent=63 // pred_check_branch
        %851 = sbr.rel (%p849) target = $region72
      $region71: #{up_forward.4} parent=63 // pred_region
        %p852 = scmp.lt.s32.totalorder %s24, 1
        %s853 = scalar_select %p852, %s24, 1
        %s854 = scalar_lea.vmem %s5, %s853
      $region72: #{up_forward.4} parent=63 // pred_fallthru
        _
      // Predicated region
      $region73: #{up_forward.4} parent=63 // pred_check
        %p855 = pneg %p209
      $region74: #{up_forward.4} parent=63 // pred_check_branch
        %857 = sbr.rel (%p855) target = $region76
      $region75: #{up_forward.4} parent=63 // pred_region
        %p858 = scmp.lt.s32.totalorder %s24, 1
        %s859 = scalar_select %p858, %s24, 1
        %s860 = scalar_lea.vmem %s6, %s859
      $region76: #{up_forward.4} parent=63 // pred_fallthru
        _
    $region64: #{up_forward.4} parent=5 // pred_fallthru
      _
  $region6: #{up_forward.4} parent=0 // loop_footer
    %s17 = sadd.s32 1, %s13
  $region7: #{up_forward.4} parent=0 // loop_footer_branch
    %12 = sbr.rel target = $region3
  $region8: #{up_forward.4} parent=0 // loop_exit
    _

// kernel: up_forward.5
$region0: #{up_forward.5}
  #allocation0 [shape = 'u32[]', space=smem, size = 0x4, offset = 0x4, fixed_abs, tag = 'smem constant byte address 0x4 - core index']
  #allocation1 [shape = 'u32[144,128]{1,0:T(1,128)}', space=vmem, size = 0x12000, scoped, tag = 'internal scratch']
  %s0 = inlined_call_operand.vmem [shape: f32[32,128], index: 0, kind: input, shape index: {}]
  %s1 = inlined_call_operand.vmem [shape: f32[1,128], index: 1, kind: input, shape index: {}]
  %s2 = inlined_call_operand.vmem [shape: f32[1,128], index: 2, kind: input, shape index: {}]
  %s3 = inlined_call_operand.vmem [shape: f32[32,128], index: 3, kind: output, shape index: {}]
  %s4 = sld [smem:[#allocation0]]
  $region22: #{up_forward.5} parent=0
    _
  %s6 = ssub.s32 1, %s4
  %s7 = scalar_select 0, %s6, %s4
  // Predicated region
  $region2: #{up_forward.5} parent=0 // pred_check
    _
  $region3: #{up_forward.5} parent=0 // pred_check_branch
    %9 = sbr.rel (0) target = $region5
  $region4: #{up_forward.5} parent=0 // pred_region
    _
  $region5: #{up_forward.5} parent=0 // pred_fallthru
    _
  // Predicated region
  $region6: #{up_forward.5} parent=0 // pred_check
    _
  $region7: #{up_forward.5} parent=0 // pred_check_branch
    %11 = sbr.rel (0) target = $region9
  $region8: #{up_forward.5} parent=0 // pred_region
    _
  $region9: #{up_forward.5} parent=0 // pred_fallthru
    _
  // Predicated region
  $region10: #{up_forward.5} parent=0 // pred_check
    _
  $region11: #{up_forward.5} parent=0 // pred_check_branch
    %13 = sbr.rel (0) target = $region13
  $region12: #{up_forward.5} parent=0 // pred_region
    _
  $region13: #{up_forward.5} parent=0 // pred_fallthru
    _
  %v14 = vld [vmem:[%s0] sm:$0xff]
  %v15 = vld [vmem:[%s0 + $0x8] sm:$0xff]
  %v16 = vld [vmem:[%s0 + $0x10] sm:$0xff]
  %v17 = vld [vmem:[%s0 + $0x18] sm:$0xff]
  %v18 = vld [vmem:[%s1] sm:$0x1]
  %v20 = vlaneseq
  %v21 = vshrl.u32 %v20, 7
  %v22 = vsub.s32 0, %v21
  %v23 = vrot.slane %v18, %v22
  %v25 = vmul.f32 %v14, %v23
  %v26 = vmul.f32 %v15, %v23
  %v27 = vmul.f32 %v16, %v23
  %v28 = vmul.f32 %v17, %v23
  %v29 = vld [vmem:[%s2] sm:$0x1]
  %v31 = vlaneseq
  %v32 = vshrl.u32 %v31, 7
  %v33 = vsub.s32 0, %v32
  %v34 = vrot.slane %v29, %v33
  %v36 = vadd.f32 %v25, %v34
  %v37 = vadd.f32 %v26, %v34
  %v38 = vadd.f32 %v27, %v34
  %v39 = vadd.f32 %v28, %v34
  %40 = vst [vmem:[%s3] sm:$0xff] %v36
  %41 = vst [vmem:[%s3 + $0x8] sm:$0xff] %v37
  %42 = vst [vmem:[%s3 + $0x10] sm:$0xff] %v38
  %43 = vst [vmem:[%s3 + $0x18] sm:$0xff] %v39
  // Predicated region
  $region14: #{up_forward.5} parent=0 // pred_check
    _
  $region15: #{up_forward.5} parent=0 // pred_check_branch
    %45 = sbr.rel (0) target = $region17
  $region16: #{up_forward.5} parent=0 // pred_region
    _
  $region17: #{up_forward.5} parent=0 // pred_fallthru
    _
  // Predicated region
  $region18: #{up_forward.5} parent=0 // pred_check
    _
  $region19: #{up_forward.5} parent=0 // pred_check_branch
    %47 = sbr.rel (0) target = $region21
  $region20: #{up_forward.5} parent=0 // pred_region
    _
  $region21: #{up_forward.5} parent=0 // pred_fallthru
    _

</llo_original>
